<compile_context>
chip_gen: v6e
topology: v6e:2x2x1
jax: 0.10.0
libtpu: 0.0.40
codegen_flags: <defaults>
</compile_context>

<pallas_src>
import jax
import jax.numpy as jnp
from jax.experimental import pallas as pl
from jax.experimental.pallas import tpu as pltpu


# ------------------------------------------------------------------ utilities
def _round_up(x, m):
    return (x + m - 1) // m * m


def _pad2(arr, shape):
    pads = [(0, t - s) for s, t in zip(arr.shape, shape)]
    if any(p[1] for p in pads):
        return jnp.pad(arr, pads)
    return arr


def _vmem_cap_bytes():
    """Per-generation usable VMEM budget (leave DMA / double-buffer headroom)."""
    try:
        kind = jax.devices()[0].device_kind.lower()
    except Exception:
        kind = ""
    if "v7" in kind:
        return 48 * 1024 * 1024          # 64 MiB physical on v7x
    return 96 * 1024 * 1024              # 128 MiB physical on v5e / v6e


# --------------------------------------------------------------- fused kernel
def _make_fused_kernel(tile_n, n_tiles):
    """grid = (phase, row_tile): phase 0 -> H1, phase 1 -> H2 + pool + MLP."""

    def kernel(a_ref, xw1_ref, b1_ref, w2_ref, b2_ref, batch_ref,
               invc_ref, wm_ref, bm_ref,
               out_ref, gx_ref, h1_ref, acc_ref):
        phase = pl.program_id(0)
        i = pl.program_id(1)
        row = pl.multiple_of(i * tile_n, tile_n)
        a_tile = a_ref.at[pl.ds(row, tile_n), :]      # view, no load yet

        # ---- phase 0 : H1 = relu(A @ (X W1) + b1) for this row tile --------
        @pl.when(phase == 0)
        def _layer1():
            ax = jnp.dot(a_tile[...], xw1_ref[...],
                         preferred_element_type=jnp.float32)
            h1 = jnp.maximum(ax + b1_ref[...], 0.0)   # ReLU in f32
            # dropout(p=0.0) -> identity (eval mode)
            h1_ref[pl.ds(row, tile_n), :] = h1.astype(h1_ref.dtype)

        # ---- phase 1 : H2 = (A @ H1) @ W2 + b2 ; segment-sum into acc ------
        is_l2 = phase == 1

        @pl.when(jnp.logical_and(is_l2, i == 0))
        def _init_acc():
            acc_ref[...] = jnp.zeros_like(acc_ref)

        @pl.when(is_l2)
        def _layer2_pool():
            ah = jnp.dot(a_tile[...], h1_ref[...],
                         preferred_element_type=jnp.float32)
            h2 = jnp.dot(ah.astype(jnp.bfloat16), w2_ref[...],
                         preferred_element_type=jnp.float32) + b2_ref[...]
            g_p = acc_ref.shape[0]
            # one-hot graph membership, built directly as [G_pad, tile_n]
            gid = jax.lax.broadcasted_iota(jnp.int32, (g_p, tile_n), 0)
            onehot = (batch_ref[...] == gid).astype(jnp.bfloat16)
            acc_ref[...] += jnp.dot(onehot, h2.astype(jnp.bfloat16),
                                    preferred_element_type=jnp.float32)

        @pl.when(jnp.logical_and(is_l2, i == n_tiles - 1))
        def _finalize():
            gxv = acc_ref[...] * invc_ref[...]        # global_mean_pool
            gx_ref[...] = gxv.astype(gx_ref.dtype)
            outv = jnp.dot(gxv.astype(jnp.bfloat16), wm_ref[...],
                           preferred_element_type=jnp.float32) + bm_ref[...]
            out_ref[...] = outv.astype(out_ref.dtype)

    return kernel


# -------------------------------------------------------------------- wrapper
def base_model_forward(x, a_hat, batch, params, num_graphs, tile_n=256):
    """x: [N, F_in] f32, a_hat: [N, N] f32, batch: [N] int32 in [0, num_graphs)."""
    n, f_in = x.shape
    hid = params["w1"].shape[1]
    out_size = params["wm"].shape[1]

    f32, bf16 = jnp.float32, jnp.bfloat16
    hid_p = _round_up(hid, 128)
    out_p = _round_up(out_size, 128)
    g_p = _round_up(num_graphs, 8)
    n_p = _round_up(n, tile_n)
    n_tiles = n_p // tile_n

    # X @ W1 precomputed outside the kernel (tiny [N,F_in]@[F_in,hid] glue);
    # keeps the lane-sparse F_in dimension out of the kernel entirely.
    xw1 = jnp.dot(x, params["w1"], preferred_element_type=f32)
    xw1_p = _pad2(xw1, (n_p, hid_p)).astype(bf16)

    b1 = _pad2(params["b1"], (1, hid_p)).astype(f32)
    w2 = _pad2(params["w2"], (hid_p, hid_p)).astype(bf16)
    b2 = _pad2(params["b2"], (1, hid_p)).astype(f32)
    wm = _pad2(params["wm"], (hid_p, out_p)).astype(bf16)
    bm = _pad2(params["bm"], (1, out_p)).astype(f32)

    a_p = _pad2(a_hat, (n_p, n_p)).astype(bf16)
    # batch ids along lanes; padded nodes get id -1 so they never pool.
    batch_p = jnp.full((1, n_p), -1, jnp.int32).at[0, :n].set(
        batch.astype(jnp.int32))

    # Per-graph inverse node counts (tiny glue; empty graphs pool to 0).
    one = (batch[None, :] == jnp.arange(num_graphs, dtype=jnp.int32)[:, None])
    counts = one.astype(f32).sum(axis=1)
    inv = jnp.where(counts > 0, 1.0 / jnp.maximum(counts, 1.0), 0.0)
    invc = jnp.zeros((g_p, 1), f32).at[:num_graphs, 0].set(inv)

    # ----------------------- VMEM budget / per-generation limit -------------
    resident_bytes = (
        2 * n_p * n_p                                  # A_hat (bf16, resident)
        + 2 * n_p * hid_p                              # XW1 (resident)
        + 2 * n_p * hid_p                              # H1 scratch
        + 2 * hid_p * hid_p + 2 * hid_p * out_p        # W2, Wm
        + 4 * g_p * (2 * hid_p + out_p)                # acc + gx + out
        + 4 * (2 * hid_p + out_p + g_p)                # biases + invc
        + 2 * 2 * 4 * tile_n)                          # batch tiles (dbl-buf)
    vmem_cap = _vmem_cap_bytes()
    if resident_bytes > int(0.9 * vmem_cap):
        # TODO(synk): K-tiled streaming variant for A_hat larger than VMEM.
        raise ValueError(
            f"resident footprint {resident_bytes} B exceeds VMEM budget "
            f"{vmem_cap} B; streaming variant not implemented.")
    vmem_limit = min(vmem_cap, max(32 * 1024 * 1024, 2 * resident_bytes))

    cost = pl.CostEstimate(
        flops=(4 * n_p * n_p * hid_p                   # A@XW1 and A@H1
               + 2 * n_p * hid_p * hid_p               # (A H1) @ W2
               + 2 * g_p * n_p * hid_p                 # pooling matmul
               + 2 * g_p * hid_p * out_p),             # final Linear
        transcendentals=0,
        bytes_accessed=(2 * n_p * n_p + 2 * n_p * hid_p + 2 * hid_p * hid_p
                        + 2 * hid_p * out_p + 4 * n_p
                        + 4 * (2 * hid_p + out_p + g_p)
                        + 4 * g_p * (hid_p + out_p)))

    kernel = _make_fused_kernel(tile_n, n_tiles)
    out_pad, gx_pad = pl.pallas_call(
        kernel,
        out_shape=(jax.ShapeDtypeStruct((g_p, out_p), f32),
                   jax.ShapeDtypeStruct((g_p, hid_p), f32)),
        grid_spec=pltpu.PrefetchScalarGridSpec(
            num_scalar_prefetch=0,
            grid=(2, n_tiles),                         # (phase, node-row tile)
            in_specs=[
                pl.BlockSpec((n_p, n_p), lambda p, i: (0, 0)),      # A resident
                pl.BlockSpec((n_p, hid_p), lambda p, i: (0, 0)),    # XW1
                pl.BlockSpec((1, hid_p), lambda p, i: (0, 0)),      # b1
                pl.BlockSpec((hid_p, hid_p), lambda p, i: (0, 0)),  # W2
                pl.BlockSpec((1, hid_p), lambda p, i: (0, 0)),      # b2
                pl.BlockSpec((1, tile_n), lambda p, i: (0, i)),     # batch ids
                pl.BlockSpec((g_p, 1), lambda p, i: (0, 0)),        # 1/counts
                pl.BlockSpec((hid_p, out_p), lambda p, i: (0, 0)),  # Wm
                pl.BlockSpec((1, out_p), lambda p, i: (0, 0)),      # bm
            ],
            out_specs=(pl.BlockSpec((g_p, out_p), lambda p, i: (0, 0)),
                       pl.BlockSpec((g_p, hid_p), lambda p, i: (0, 0))),
            scratch_shapes=[pltpu.VMEM((n_p, hid_p), bf16),         # H1
                            pltpu.VMEM((g_p, hid_p), f32)],         # pooled acc
        ),
        compiler_params=pltpu.CompilerParams(
            # phase axis and the pooled accumulator force sequential execution
            dimension_semantics=("arbitrary", "arbitrary"),
            vmem_limit_bytes=vmem_limit),
        cost_estimate=cost,
    )(a_p, xw1_p, b1, w2, b2, batch_p, invc, wm, bm)

    output = out_pad[:num_graphs, :out_size]
    gx = gx_pad[:num_graphs, :hid]
    return output, gx


# --------------------------------------------------------------------- params
def init_params(key, inp_size, hid_size, out_size):
    k1, k2, k3, k4, k5, k6 = jax.random.split(key, 6)
    s = 0.1
    return {
        # GCNConv weights stored as [in, out]; biases as [1, out].
        "w1": jax.random.normal(k1, (inp_size, hid_size), jnp.float32) * s,
        "b1": jax.random.normal(k2, (1, hid_size), jnp.float32) * s,
        "w2": jax.random.normal(k3, (hid_size, hid_size), jnp.float32) * s,
        "b2": jax.random.normal(k4, (1, hid_size), jnp.float32) * s,
        # nn.Linear(hid, out) stored directly as [hid, out].
        "wm": jax.random.normal(k5, (hid_size, out_size), jnp.float32) * s,
        "bm": jax.random.normal(k6, (1, out_size), jnp.float32) * s,
    }


# ----------------------------------------------------- pure-JAX reference path
def reference_forward(x, a_hat, batch, params, num_graphs):
    bf16, f32 = jnp.bfloat16, jnp.float32
    ab = a_hat.astype(bf16)
    xw1 = jnp.dot(x, params["w1"], preferred_element_type=f32)
    h1 = jnp.maximum(
        jnp.dot(ab, xw1.astype(bf16), preferred_element_type=f32)
        + params["b1"], 0.0)
    ah = jnp.dot(ab, h1.astype(bf16), preferred_element_type=f32)
    h2 = jnp.dot(ah.astype(bf16), params["w2"].astype(bf16),
                 preferred_element_type=f32) + params["b2"]
    one = (batch[None, :] == jnp.arange(num_graphs)[:, None]).astype(f32)
    counts = jnp.maximum(one.sum(axis=1, keepdims=True), 1.0)
    gx = jnp.dot(one, h2) / counts
    out = jnp.dot(gx.astype(bf16), params["wm"].astype(bf16),
                  preferred_element_type=f32) + params["bm"]
    return out, gx


# ----------------------------------------------------------------------- main
if __name__ == "__main__":
    key = jax.random.PRNGKey(0)
    k_x, k_a, k_p = jax.random.split(key, 3)

    # Small synthetic batched graph: 2 graphs x 64 nodes = 128 nodes.
    N, F_IN, HID, OUT, G = 128, 8, 32, 4, 2

    x = jax.random.normal(k_x, (N, F_IN), jnp.float32)
    batch = jnp.repeat(jnp.arange(G, dtype=jnp.int32), N // G)

    # Random block-diagonal adjacency, symmetrized, then GCN normalization.
    rand = jax.random.uniform(k_a, (N, N))
    adj = (rand > 0.9).astype(jnp.float32)
    adj = jnp.maximum(adj, adj.T)
    same_graph = (batch[:, None] == batch[None, :]).astype(jnp.float32)
    adj = adj * same_graph + jnp.eye(N, dtype=jnp.float32)     # self loops
    deg = adj.sum(axis=1)
    d_inv_sqrt = 1.0 / jnp.sqrt(jnp.maximum(deg, 1.0))
    a_hat = adj * d_inv_sqrt[:, None] * d_inv_sqrt[None, :]

    params = init_params(k_p, F_IN, HID, OUT)

    fwd = jax.jit(base_model_forward, static_argnames=("num_graphs", "tile_n"))
    output, gx = fwd(x, a_hat, batch, params, num_graphs=G)
    jax.block_until_ready((output, gx))

    assert output.shape == (G, OUT) and gx.shape == (G, HID)

    ref_out, ref_gx = reference_forward(x, a_hat, batch, params, G)
    assert bool(jnp.allclose(output, ref_out, atol=2e-2, rtol=2e-2)), "output mismatch"
    assert bool(jnp.allclose(gx, ref_gx, atol=2e-2, rtol=2e-2)), "gx mismatch"

    print("KERNEL_OK")
</pallas_src>

<mosaic_0001>
module attributes {stable_mosaic.version = 11 : i64} {
  func.func @kernel(%arg0: i32, %arg1: i32, %arg2: memref<256x256xbf16, #tpu.memory_space<vmem>>, %arg3: memref<256x128xbf16, #tpu.memory_space<vmem>>, %arg4: memref<1x128xf32, #tpu.memory_space<vmem>>, %arg5: memref<128x128xbf16, #tpu.memory_space<vmem>>, %arg6: memref<1x128xf32, #tpu.memory_space<vmem>>, %arg7: memref<1x256xi32, #tpu.memory_space<vmem>>, %arg8: memref<8x1xf32, #tpu.memory_space<vmem>>, %arg9: memref<128x128xbf16, #tpu.memory_space<vmem>>, %arg10: memref<1x128xf32, #tpu.memory_space<vmem>>, %arg11: memref<8x128xf32, #tpu.memory_space<vmem>>, %arg12: memref<8x128xf32, #tpu.memory_space<vmem>>, %arg13: memref<256x128xbf16, #tpu.memory_space<vmem>>, %arg14: memref<8x128xf32, #tpu.memory_space<vmem>>) attributes {dimension_semantics = [#tpu.dimension_semantics<arbitrary>, #tpu.dimension_semantics<arbitrary>], iteration_bounds = array<i64: 2, 1>, scalar_prefetch = 0 : i64, scratch_operands = 2 : i64, tpu.core_type = #tpu.core_type<tc>, window_params = [{pipeline_mode = #tpu.pipeline_mode<synchronous>, transform_indices = @transform_0, window_bounds = array<i64: 256, 256>}, {pipeline_mode = #tpu.pipeline_mode<synchronous>, transform_indices = @transform_1, window_bounds = array<i64: 256, 128>}, {pipeline_mode = #tpu.pipeline_mode<synchronous>, transform_indices = @transform_2, window_bounds = array<i64: 1, 128>}, {pipeline_mode = #tpu.pipeline_mode<synchronous>, transform_indices = @transform_3, window_bounds = array<i64: 128, 128>}, {pipeline_mode = #tpu.pipeline_mode<synchronous>, transform_indices = @transform_4, window_bounds = array<i64: 1, 128>}, {transform_indices = @transform_5, window_bounds = array<i64: 1, 256>}, {pipeline_mode = #tpu.pipeline_mode<synchronous>, transform_indices = @transform_6, window_bounds = array<i64: 8, 1>}, {pipeline_mode = #tpu.pipeline_mode<synchronous>, transform_indices = @transform_7, window_bounds = array<i64: 128, 128>}, {pipeline_mode = #tpu.pipeline_mode<synchronous>, transform_indices = @transform_8, window_bounds = array<i64: 1, 128>}, {pipeline_mode = #tpu.pipeline_mode<synchronous>, transform_indices = @transform_9, window_bounds = array<i64: 8, 128>}, {pipeline_mode = #tpu.pipeline_mode<synchronous>, transform_indices = @transform_10, window_bounds = array<i64: 8, 128>}]} {
    %c256_i32 = arith.constant 256 : i32
    %0 = arith.muli %arg1, %c256_i32 : i32
    %1 = tpu.assume_multiple %0, 256 : i32
    %c0_i32 = arith.constant 0 : i32
    %2 = arith.cmpi eq, %arg0, %c0_i32 : i32
    %3 = arith.extui %2 : i1 to i32
    %c0_i32_0 = arith.constant 0 : i32
    %4 = arith.cmpi ne, %3, %c0_i32_0 : i32
    scf.if %4 {
      %16 = arith.index_cast %1 : i32 to index
      %c0 = arith.constant 0 : index
      %17 = vector.load %arg2[%16, %c0] : memref<256x256xbf16, #tpu.memory_space<vmem>>, vector<256x256xbf16>
      %c0_6 = arith.constant 0 : index
      %c0_7 = arith.constant 0 : index
      %18 = vector.load %arg3[%c0_6, %c0_7] : memref<256x128xbf16, #tpu.memory_space<vmem>>, vector<256x128xbf16>
      %cst = arith.constant dense<0.000000e+00> : vector<256x128xf32>
      %19 = tpu.matmul %17, %18, %cst {dimension_numbers = #tpu.dot_dimension_numbers<[1], [0], [0], [1], [0, 0, 1, 1], [], []>} : vector<256x256xbf16>, vector<256x128xbf16>, vector<256x128xf32> -> vector<256x128xf32>
      %c0_8 = arith.constant 0 : index
      %c0_9 = arith.constant 0 : index
      %20 = vector.load %arg4[%c0_8, %c0_9] : memref<1x128xf32, #tpu.memory_space<vmem>>, vector<1x128xf32>
      %21 = vector.broadcast %20 : vector<1x128xf32> to vector<256x128xf32>
      %22 = arith.addf %19, %21 : vector<256x128xf32>
      %cst_10 = arith.constant 0.000000e+00 : f32
      %23 = vector.broadcast %cst_10 : f32 to vector<256x128xf32>
      %24 = arith.maximumf %22, %23 : vector<256x128xf32>
      %25 = arith.truncf %24 : vector<256x128xf32> to vector<256x128xbf16>
      %26 = arith.index_cast %1 : i32 to index
      %c0_11 = arith.constant 0 : index
      %27 = vector.load %arg13[%26, %c0_11] : memref<256x128xbf16, #tpu.memory_space<vmem>>, vector<256x128xbf16>
      tpu.vector_store %arg13[%26, %c0_11], %25 {strides = array<i32>} : memref<256x128xbf16, #tpu.memory_space<vmem>>, vector<256x128xbf16>,
    } else {
    }
    %c1_i32 = arith.constant 1 : i32
    %5 = arith.cmpi eq, %arg0, %c1_i32 : i32
    %c0_i32_1 = arith.constant 0 : i32
    %6 = arith.cmpi eq, %arg1, %c0_i32_1 : i32
    %7 = arith.andi %5, %6 : i1
    %8 = arith.extui %7 : i1 to i32
    %c0_i32_2 = arith.constant 0 : i32
    %9 = arith.cmpi ne, %8, %c0_i32_2 : i32
    scf.if %9 {
      %cst = arith.constant 0.000000e+00 : f32
      %16 = vector.broadcast %cst : f32 to vector<8x128xf32>
      %c0 = arith.constant 0 : index
      %c0_6 = arith.constant 0 : index
      %17 = vector.load %arg14[%c0, %c0_6] : memref<8x128xf32, #tpu.memory_space<vmem>>, vector<8x128xf32>
      tpu.vector_store %arg14[%c0, %c0_6], %16 {strides = array<i32>} : memref<8x128xf32, #tpu.memory_space<vmem>>, vector<8x128xf32>,
    } else {
    }
    %10 = arith.extui %5 : i1 to i32
    %c0_i32_3 = arith.constant 0 : i32
    %11 = arith.cmpi ne, %10, %c0_i32_3 : i32
    scf.if %11 {
      %16 = arith.index_cast %1 : i32 to index
      %c0 = arith.constant 0 : index
      %17 = vector.load %arg2[%16, %c0] : memref<256x256xbf16, #tpu.memory_space<vmem>>, vector<256x256xbf16>
      %c0_6 = arith.constant 0 : index
      %c0_7 = arith.constant 0 : index
      %18 = vector.load %arg13[%c0_6, %c0_7] : memref<256x128xbf16, #tpu.memory_space<vmem>>, vector<256x128xbf16>
      %cst = arith.constant dense<0.000000e+00> : vector<256x128xf32>
      %19 = tpu.matmul %17, %18, %cst {dimension_numbers = #tpu.dot_dimension_numbers<[1], [0], [0], [1], [0, 0, 1, 1], [], []>} : vector<256x256xbf16>, vector<256x128xbf16>, vector<256x128xf32> -> vector<256x128xf32>
      %20 = arith.truncf %19 : vector<256x128xf32> to vector<256x128xbf16>
      %c0_8 = arith.constant 0 : index
      %c0_9 = arith.constant 0 : index
      %21 = vector.load %arg5[%c0_8, %c0_9] : memref<128x128xbf16, #tpu.memory_space<vmem>>, vector<128x128xbf16>
      %cst_10 = arith.constant dense<0.000000e+00> : vector<256x128xf32>
      %22 = tpu.matmul %20, %21, %cst_10 {dimension_numbers = #tpu.dot_dimension_numbers<[1], [0], [0], [1], [0, 0, 1, 1], [], []>} : vector<256x128xbf16>, vector<128x128xbf16>, vector<256x128xf32> -> vector<256x128xf32>
      %c0_11 = arith.constant 0 : index
      %c0_12 = arith.constant 0 : index
      %23 = vector.load %arg6[%c0_11, %c0_12] : memref<1x128xf32, #tpu.memory_space<vmem>>, vector<1x128xf32>
      %24 = vector.broadcast %23 : vector<1x128xf32> to vector<256x128xf32>
      %25 = arith.addf %22, %24 : vector<256x128xf32>
      %26 = tpu.iota {dimensions = array<i32: 0>} : vector<8x256xi32>
      %c0_13 = arith.constant 0 : index
      %c0_14 = arith.constant 0 : index
      %27 = vector.load %arg7[%c0_13, %c0_14] : memref<1x256xi32, #tpu.memory_space<vmem>>, vector<1x256xi32>
      %28 = vector.broadcast %27 : vector<1x256xi32> to vector<8x256xi32>
      %29 = arith.cmpi eq, %28, %26 : vector<8x256xi32>
      %30 = arith.extui %29 : vector<8x256xi1> to vector<8x256xi32>
      %31 = arith.sitofp %30 : vector<8x256xi32> to vector<8x256xf32>
      %32 = arith.truncf %31 : vector<8x256xf32> to vector<8x256xbf16>
      %c0_15 = arith.constant 0 : index
      %c0_16 = arith.constant 0 : index
      %33 = vector.load %arg14[%c0_15, %c0_16] : memref<8x128xf32, #tpu.memory_space<vmem>>, vector<8x128xf32>
      %34 = arith.truncf %25 : vector<256x128xf32> to vector<256x128xbf16>
      %cst_17 = arith.constant dense<0.000000e+00> : vector<8x128xf32>
      %35 = tpu.matmul %32, %34, %cst_17 {dimension_numbers = #tpu.dot_dimension_numbers<[1], [0], [0], [1], [0, 0, 1, 1], [], []>} : vector<8x256xbf16>, vector<256x128xbf16>, vector<8x128xf32> -> vector<8x128xf32>
      %36 = arith.addf %33, %35 : vector<8x128xf32>
      %c0_18 = arith.constant 0 : index
      %c0_19 = arith.constant 0 : index
      %37 = vector.load %arg14[%c0_18, %c0_19] : memref<8x128xf32, #tpu.memory_space<vmem>>, vector<8x128xf32>
      tpu.vector_store %arg14[%c0_18, %c0_19], %36 {strides = array<i32>} : memref<8x128xf32, #tpu.memory_space<vmem>>, vector<8x128xf32>,
    } else {
    }
    %c0_i32_4 = arith.constant 0 : i32
    %12 = arith.cmpi eq, %arg1, %c0_i32_4 : i32
    %13 = arith.andi %5, %12 : i1
    %14 = arith.extui %13 : i1 to i32
    %c0_i32_5 = arith.constant 0 : i32
    %15 = arith.cmpi ne, %14, %c0_i32_5 : i32
    scf.if %15 {
      %c0 = arith.constant 0 : index
      %c0_6 = arith.constant 0 : index
      %16 = vector.load %arg14[%c0, %c0_6] : memref<8x128xf32, #tpu.memory_space<vmem>>, vector<8x128xf32>
      %c0_7 = arith.constant 0 : index
      %c0_8 = arith.constant 0 : index
      %17 = vector.load %arg8[%c0_7, %c0_8] : memref<8x1xf32, #tpu.memory_space<vmem>>, vector<8x1xf32>
      %18 = vector.broadcast %17 : vector<8x1xf32> to vector<8x128xf32>
      %19 = arith.mulf %16, %18 : vector<8x128xf32>
      %c0_9 = arith.constant 0 : index
      %c0_10 = arith.constant 0 : index
      %20 = vector.load %arg12[%c0_9, %c0_10] : memref<8x128xf32, #tpu.memory_space<vmem>>, vector<8x128xf32>
      tpu.vector_store %arg12[%c0_9, %c0_10], %19 {strides = array<i32>} : memref<8x128xf32, #tpu.memory_space<vmem>>, vector<8x128xf32>,
      %21 = arith.truncf %19 : vector<8x128xf32> to vector<8x128xbf16>
      %c0_11 = arith.constant 0 : index
      %c0_12 = arith.constant 0 : index
      %22 = vector.load %arg9[%c0_11, %c0_12] : memref<128x128xbf16, #tpu.memory_space<vmem>>, vector<128x128xbf16>
      %cst = arith.constant dense<0.000000e+00> : vector<8x128xf32>
      %23 = tpu.matmul %21, %22, %cst {dimension_numbers = #tpu.dot_dimension_numbers<[1], [0], [0], [1], [0, 0, 1, 1], [], []>} : vector<8x128xbf16>, vector<128x128xbf16>, vector<8x128xf32> -> vector<8x128xf32>
      %c0_13 = arith.constant 0 : index
      %c0_14 = arith.constant 0 : index
      %24 = vector.load %arg10[%c0_13, %c0_14] : memref<1x128xf32, #tpu.memory_space<vmem>>, vector<1x128xf32>
      %25 = vector.broadcast %24 : vector<1x128xf32> to vector<8x128xf32>
      %26 = arith.addf %23, %25 : vector<8x128xf32>
      %c0_15 = arith.constant 0 : index
      %c0_16 = arith.constant 0 : index
      %27 = vector.load %arg11[%c0_15, %c0_16] : memref<8x128xf32, #tpu.memory_space<vmem>>, vector<8x128xf32>
      tpu.vector_store %arg11[%c0_15, %c0_16], %26 {strides = array<i32>} : memref<8x128xf32, #tpu.memory_space<vmem>>, vector<8x128xf32>,
    } else {
    }
    return
  }
  func.func @transform_0(%arg0: i32, %arg1: i32) -> (i32, i32) {
    %c0_i32 = arith.constant 0 : i32
    %c0_i32_0 = arith.constant 0 : i32
    %c0_i32_1 = arith.constant 0 : i32
    return %c0_i32, %c0_i32_0 : i32, i32
  }
  func.func @transform_1(%arg0: i32, %arg1: i32) -> (i32, i32) {
    %c0_i32 = arith.constant 0 : i32
    %c0_i32_0 = arith.constant 0 : i32
    %c0_i32_1 = arith.constant 0 : i32
    return %c0_i32, %c0_i32_0 : i32, i32
  }
  func.func @transform_2(%arg0: i32, %arg1: i32) -> (i32, i32) {
    %c0_i32 = arith.constant 0 : i32
    %c0_i32_0 = arith.constant 0 : i32
    %c0_i32_1 = arith.constant 0 : i32
    return %c0_i32, %c0_i32_0 : i32, i32
  }
  func.func @transform_3(%arg0: i32, %arg1: i32) -> (i32, i32) {
    %c0_i32 = arith.constant 0 : i32
    %c0_i32_0 = arith.constant 0 : i32
    %c0_i32_1 = arith.constant 0 : i32
    return %c0_i32, %c0_i32_0 : i32, i32
  }
  func.func @transform_4(%arg0: i32, %arg1: i32) -> (i32, i32) {
    %c0_i32 = arith.constant 0 : i32
    %c0_i32_0 = arith.constant 0 : i32
    %c0_i32_1 = arith.constant 0 : i32
    return %c0_i32, %c0_i32_0 : i32, i32
  }
  func.func @transform_5(%arg0: i32, %arg1: i32) -> (i32, i32) {
    %c0_i32 = arith.constant 0 : i32
    %c0_i32_0 = arith.constant 0 : i32
    return %c0_i32, %arg1 : i32, i32
  }
  func.func @transform_6(%arg0: i32, %arg1: i32) -> (i32, i32) {
    %c0_i32 = arith.constant 0 : i32
    %c0_i32_0 = arith.constant 0 : i32
    %c0_i32_1 = arith.constant 0 : i32
    return %c0_i32, %c0_i32_0 : i32, i32
  }
  func.func @transform_7(%arg0: i32, %arg1: i32) -> (i32, i32) {
    %c0_i32 = arith.constant 0 : i32
    %c0_i32_0 = arith.constant 0 : i32
    %c0_i32_1 = arith.constant 0 : i32
    return %c0_i32, %c0_i32_0 : i32, i32
  }
  func.func @transform_8(%arg0: i32, %arg1: i32) -> (i32, i32) {
    %c0_i32 = arith.constant 0 : i32
    %c0_i32_0 = arith.constant 0 : i32
    %c0_i32_1 = arith.constant 0 : i32
    return %c0_i32, %c0_i32_0 : i32, i32
  }
  func.func @transform_9(%arg0: i32, %arg1: i32) -> (i32, i32) {
    %c0_i32 = arith.constant 0 : i32
    %c0_i32_0 = arith.constant 0 : i32
    %c0_i32_1 = arith.constant 0 : i32
    return %c0_i32, %c0_i32_0 : i32, i32
  }
  func.func @transform_10(%arg0: i32, %arg1: i32) -> (i32, i32) {
    %c0_i32 = arith.constant 0 : i32
    %c0_i32_0 = arith.constant 0 : i32
    %c0_i32_1 = arith.constant 0 : i32
    return %c0_i32, %c0_i32_0 : i32, i32
  }
}

</mosaic_0001>

<llo_original>
// kernel: base_model_forward.1
$region0: #{base_model_forward.1}
  #allocation0 [shape = 'u32[]', space=smem, size = 0x4, offset = 0x4, fixed_abs, tag = 'smem constant byte address 0x4 - core index']
  #allocation1 [shape = 'u32[144,128]{1,0:T(1,128)}', space=vmem, size = 0x12000, scoped, tag = 'internal scratch']
  #allocation2 [shape = 'bf16[256,128]{1,0:T(8,128)(2,1)}', space=vmem, size = 0x10000, scoped, tag = 'scratch operand']
  #allocation3 [shape = 'f32[8,128]{1,0:T(8,128)}', space=vmem, size = 0x1000, scoped, tag = 'scratch operand']
  %s0 = inlined_call_operand.vmem [shape: bf16[256,256], index: 0, kind: input, shape index: {}]
  %s1 = inlined_call_operand.vmem [shape: bf16[256,128], index: 1, kind: input, shape index: {}]
  %s2 = inlined_call_operand.vmem [shape: f32[1,128], index: 2, kind: input, shape index: {}]
  %s3 = inlined_call_operand.vmem [shape: bf16[128,128], index: 3, kind: input, shape index: {}]
  %s4 = inlined_call_operand.vmem [shape: f32[1,128], index: 4, kind: input, shape index: {}]
  %s5 = inlined_call_operand.vmem [shape: s32[1,256], index: 5, kind: input, shape index: {}]
  %s6 = inlined_call_operand.vmem [shape: f32[8,1], index: 6, kind: input, shape index: {}]
  %s7 = inlined_call_operand.vmem [shape: bf16[128,128], index: 7, kind: input, shape index: {}]
  %s8 = inlined_call_operand.vmem [shape: f32[1,128], index: 8, kind: input, shape index: {}]
  %s9 = inlined_call_operand.vmem [shape: f32[8,128], index: 9, kind: output, shape index: {0}]
  %s10 = inlined_call_operand.vmem [shape: f32[8,128], index: 10, kind: output, shape index: {1}]
  %11 = xla_tuple %s9, %s10
  %s12 = sld [smem:[#allocation0]]
  $region93: #{base_model_forward.1} parent=0
    _
  %s14 = ssub.s32 1, %s12
  %s15 = scalar_select 0, %s14, %s12
  loop: start=0, step=1, limit=4
  $region2: #{base_model_forward.1} parent=0 // loop_pre_header
    _
  $region3: #{base_model_forward.1} parent=0 // loop_header
    %s17 = sphi 0, %s21
    %p18 = scmp.ge.s32.totalorder %s17, 4
    %s24 = sphi 0, %s36
    %s25 = sphi 0, %s32
    %s26 = sphi 0, %s24
    %s27 = sphi 0, %s25
    %s28 = sphi 0, %s26
    %s29 = sphi 0, %s27
    %s37 = sphi 0, %s37
    %s39 = sphi 0, %s37
    %s40 = sphi 0, %s39
    %s54 = sphi 0, %s40
    %s58 = sphi 0, %s58
    %s60 = sphi 0, %s58
    %s61 = sphi 0, %s60
    %s75 = sphi 0, %s61
    %s79 = sphi 0, %s79
    %s81 = sphi 0, %s79
    %s82 = sphi 0, %s81
    %s96 = sphi 0, %s82
    %s100 = sphi 0, %s100
    %s102 = sphi 0, %s100
    %s103 = sphi 0, %s102
    %s117 = sphi 0, %s103
    %s121 = sphi 0, %s121
    %s123 = sphi 0, %s121
    %s124 = sphi 0, %s123
    %s138 = sphi 0, %s124
    %s144 = sphi 0, %s146
    %s147 = sphi 0, %s144
    %s148 = sphi 0, %s147
    %s164 = sphi 0, %s148
    %s168 = sphi 0, %s168
    %s170 = sphi 0, %s168
    %s171 = sphi 0, %s170
    %s185 = sphi 0, %s171
    %s189 = sphi 0, %s189
    %s191 = sphi 0, %s189
    %s192 = sphi 0, %s191
    %s206 = sphi 0, %s192
    %s210 = sphi 0, %s210
    %s212 = sphi 0, %s210
    %s213 = sphi 0, %s212
    %s227 = sphi 0, %s213
    %s231 = sphi 0, %s231
    %s233 = sphi 0, %s231
    %s234 = sphi 0, %s233
    %s248 = sphi 0, %s234
    %s252 = sphi 0, %s252
    %s254 = sphi 0, %s252
    %s255 = sphi 0, %s254
    %s269 = sphi 0, %s255
  $region4: #{base_model_forward.1} parent=0 // loop_header_branch
    %20 = sbr.rel (%p18) target = $region8
  $region5: #{base_model_forward.1} parent=0 // loop_body
    %s22 = ssub.s32 %s17, 1
    %s23 = ssub.s32 %s17, 2
    %s30 = sadd.s32 1, %s25
    %p31 = scmp.ge.s32.totalorder %s30, 1
    %s32 = scalar_select %p31, 0, %s30
    %s33 = sadd.s32 1, %s24
    %s34 = scalar_select %p31, %s33, %s24
    %p35 = scmp.ge.s32.totalorder %s34, 2
    %s36 = scalar_select %p35, 0, %s34
    %s38 = sadd.s32 %s37, 1
    %p41 = scmp.eq.s32.totalorder %s17, 1
    %p42 = scmp.ne.s32.totalorder %s37, %s39
    %p43 = scmp.eq.s32.totalorder %s17, 0
    %p44 = por %p42, %p43
    %p45 = scmp.ne.s32.totalorder %s37, %s39
    %p46 = scmp.eq.s32.totalorder %s22, 1
    %p47 = por %p45, %p46
    %p48 = scmp.ne.s32.totalorder %s39, %s40
    %p49 = scmp.eq.s32.totalorder %s22, 0
    %p50 = por %p48, %p49
    %p51 = scmp.ne.s32.totalorder %s39, %s40
    %p52 = scmp.eq.s32.totalorder %s23, 1
    %p53 = por %p51, %p52
    %p55 = scmp.ne.s32.totalorder %s40, %s54
    %p56 = scmp.eq.s32.totalorder %s23, 0
    %p57 = por %p55, %p56
    %s59 = sadd.s32 %s58, 1
    %p62 = scmp.eq.s32.totalorder %s17, 1
    %p63 = scmp.ne.s32.totalorder %s58, %s60
    %p64 = scmp.eq.s32.totalorder %s17, 0
    %p65 = por %p63, %p64
    %p66 = scmp.ne.s32.totalorder %s58, %s60
    %p67 = scmp.eq.s32.totalorder %s22, 1
    %p68 = por %p66, %p67
    %p69 = scmp.ne.s32.totalorder %s60, %s61
    %p70 = scmp.eq.s32.totalorder %s22, 0
    %p71 = por %p69, %p70
    %p72 = scmp.ne.s32.totalorder %s60, %s61
    %p73 = scmp.eq.s32.totalorder %s23, 1
    %p74 = por %p72, %p73
    %p76 = scmp.ne.s32.totalorder %s61, %s75
    %p77 = scmp.eq.s32.totalorder %s23, 0
    %p78 = por %p76, %p77
    %s80 = sadd.s32 %s79, 1
    %p83 = scmp.eq.s32.totalorder %s17, 1
    %p84 = scmp.ne.s32.totalorder %s79, %s81
    %p85 = scmp.eq.s32.totalorder %s17, 0
    %p86 = por %p84, %p85
    %p87 = scmp.ne.s32.totalorder %s79, %s81
    %p88 = scmp.eq.s32.totalorder %s22, 1
    %p89 = por %p87, %p88
    %p90 = scmp.ne.s32.totalorder %s81, %s82
    %p91 = scmp.eq.s32.totalorder %s22, 0
    %p92 = por %p90, %p91
    %p93 = scmp.ne.s32.totalorder %s81, %s82
    %p94 = scmp.eq.s32.totalorder %s23, 1
    %p95 = por %p93, %p94
    %p97 = scmp.ne.s32.totalorder %s82, %s96
    %p98 = scmp.eq.s32.totalorder %s23, 0
    %p99 = por %p97, %p98
    %s101 = sadd.s32 %s100, 1
    %p104 = scmp.eq.s32.totalorder %s17, 1
    %p105 = scmp.ne.s32.totalorder %s100, %s102
    %p106 = scmp.eq.s32.totalorder %s17, 0
    %p107 = por %p105, %p106
    %p108 = scmp.ne.s32.totalorder %s100, %s102
    %p109 = scmp.eq.s32.totalorder %s22, 1
    %p110 = por %p108, %p109
    %p111 = scmp.ne.s32.totalorder %s102, %s103
    %p112 = scmp.eq.s32.totalorder %s22, 0
    %p113 = por %p111, %p112
    %p114 = scmp.ne.s32.totalorder %s102, %s103
    %p115 = scmp.eq.s32.totalorder %s23, 1
    %p116 = por %p114, %p115
    %p118 = scmp.ne.s32.totalorder %s103, %s117
    %p119 = scmp.eq.s32.totalorder %s23, 0
    %p120 = por %p118, %p119
    %s122 = sadd.s32 %s121, 1
    %p125 = scmp.eq.s32.totalorder %s17, 1
    %p126 = scmp.ne.s32.totalorder %s121, %s123
    %p127 = scmp.eq.s32.totalorder %s17, 0
    %p128 = por %p126, %p127
    %p129 = scmp.ne.s32.totalorder %s121, %s123
    %p130 = scmp.eq.s32.totalorder %s22, 1
    %p131 = por %p129, %p130
    %p132 = scmp.ne.s32.totalorder %s123, %s124
    %p133 = scmp.eq.s32.totalorder %s22, 0
    %p134 = por %p132, %p133
    %p135 = scmp.ne.s32.totalorder %s123, %s124
    %p136 = scmp.eq.s32.totalorder %s23, 1
    %p137 = por %p135, %p136
    %p139 = scmp.ne.s32.totalorder %s124, %s138
    %p140 = scmp.eq.s32.totalorder %s23, 0
    %p141 = por %p139, %p140
    %s142 = ssub.s32 %s25, %s32
    %p143 = scmp.eq.s32.totalorder %s142, 0
    %s145 = sadd.s32 %s144, 1
    %s146 = scalar_select %p143, %s144, %s145
    %p149 = pneg %p143
    %p150 = scmp.eq.s32.totalorder %s17, 1
    %p151 = por %p149, %p150
    %p152 = scmp.ne.s32.totalorder %s144, %s147
    %p153 = scmp.eq.s32.totalorder %s17, 0
    %p154 = por %p152, %p153
    %p155 = scmp.ne.s32.totalorder %s144, %s147
    %p156 = scmp.eq.s32.totalorder %s22, 1
    %p157 = por %p155, %p156
    %p158 = scmp.ne.s32.totalorder %s147, %s148
    %p159 = scmp.eq.s32.totalorder %s22, 0
    %p160 = por %p158, %p159
    %p161 = scmp.ne.s32.totalorder %s147, %s148
    %p162 = scmp.eq.s32.totalorder %s23, 1
    %p163 = por %p161, %p162
    %p165 = scmp.ne.s32.totalorder %s148, %s164
    %p166 = scmp.eq.s32.totalorder %s23, 0
    %p167 = por %p165, %p166
    %s169 = sadd.s32 %s168, 1
    %p172 = scmp.eq.s32.totalorder %s17, 1
    %p173 = scmp.ne.s32.totalorder %s168, %s170
    %p174 = scmp.eq.s32.totalorder %s17, 0
    %p175 = por %p173, %p174
    %p176 = scmp.ne.s32.totalorder %s168, %s170
    %p177 = scmp.eq.s32.totalorder %s22, 1
    %p178 = por %p176, %p177
    %p179 = scmp.ne.s32.totalorder %s170, %s171
    %p180 = scmp.eq.s32.totalorder %s22, 0
    %p181 = por %p179, %p180
    %p182 = scmp.ne.s32.totalorder %s170, %s171
    %p183 = scmp.eq.s32.totalorder %s23, 1
    %p184 = por %p182, %p183
    %p186 = scmp.ne.s32.totalorder %s171, %s185
    %p187 = scmp.eq.s32.totalorder %s23, 0
    %p188 = por %p186, %p187
    %s190 = sadd.s32 %s189, 1
    %p193 = scmp.eq.s32.totalorder %s17, 1
    %p194 = scmp.ne.s32.totalorder %s189, %s191
    %p195 = scmp.eq.s32.totalorder %s17, 0
    %p196 = por %p194, %p195
    %p197 = scmp.ne.s32.totalorder %s189, %s191
    %p198 = scmp.eq.s32.totalorder %s22, 1
    %p199 = por %p197, %p198
    %p200 = scmp.ne.s32.totalorder %s191, %s192
    %p201 = scmp.eq.s32.totalorder %s22, 0
    %p202 = por %p200, %p201
    %p203 = scmp.ne.s32.totalorder %s191, %s192
    %p204 = scmp.eq.s32.totalorder %s23, 1
    %p205 = por %p203, %p204
    %p207 = scmp.ne.s32.totalorder %s192, %s206
    %p208 = scmp.eq.s32.totalorder %s23, 0
    %p209 = por %p207, %p208
    %s211 = sadd.s32 %s210, 1
    %p214 = scmp.eq.s32.totalorder %s17, 1
    %p215 = scmp.ne.s32.totalorder %s210, %s212
    %p216 = scmp.eq.s32.totalorder %s17, 0
    %p217 = por %p215, %p216
    %p218 = scmp.ne.s32.totalorder %s210, %s212
    %p219 = scmp.eq.s32.totalorder %s22, 1
    %p220 = por %p218, %p219
    %p221 = scmp.ne.s32.totalorder %s212, %s213
    %p222 = scmp.eq.s32.totalorder %s22, 0
    %p223 = por %p221, %p222
    %p224 = scmp.ne.s32.totalorder %s212, %s213
    %p225 = scmp.eq.s32.totalorder %s23, 1
    %p226 = por %p224, %p225
    %p228 = scmp.ne.s32.totalorder %s213, %s227
    %p229 = scmp.eq.s32.totalorder %s23, 0
    %p230 = por %p228, %p229
    %s232 = sadd.s32 %s231, 1
    %p235 = scmp.eq.s32.totalorder %s17, 1
    %p236 = scmp.ne.s32.totalorder %s231, %s233
    %p237 = scmp.eq.s32.totalorder %s17, 0
    %p238 = por %p236, %p237
    %p239 = scmp.ne.s32.totalorder %s231, %s233
    %p240 = scmp.eq.s32.totalorder %s22, 1
    %p241 = por %p239, %p240
    %p242 = scmp.ne.s32.totalorder %s233, %s234
    %p243 = scmp.eq.s32.totalorder %s22, 0
    %p244 = por %p242, %p243
    %p245 = scmp.ne.s32.totalorder %s233, %s234
    %p246 = scmp.eq.s32.totalorder %s23, 1
    %p247 = por %p245, %p246
    %p249 = scmp.ne.s32.totalorder %s234, %s248
    %p250 = scmp.eq.s32.totalorder %s23, 0
    %p251 = por %p249, %p250
    %s253 = sadd.s32 %s252, 1
    %p256 = scmp.eq.s32.totalorder %s17, 1
    %p257 = scmp.ne.s32.totalorder %s252, %s254
    %p258 = scmp.eq.s32.totalorder %s17, 0
    %p259 = por %p257, %p258
    %p260 = scmp.ne.s32.totalorder %s252, %s254
    %p261 = scmp.eq.s32.totalorder %s22, 1
    %p262 = por %p260, %p261
    %p263 = scmp.ne.s32.totalorder %s254, %s255
    %p264 = scmp.eq.s32.totalorder %s22, 0
    %p265 = por %p263, %p264
    %p266 = scmp.ne.s32.totalorder %s254, %s255
    %p267 = scmp.eq.s32.totalorder %s23, 1
    %p268 = por %p266, %p267
    %p270 = scmp.ne.s32.totalorder %s255, %s269
    %p271 = scmp.eq.s32.totalorder %s23, 0
    %p272 = por %p270, %p271
    %p273 = scmp.le.s32.totalorder 1, %s17
    %p274 = scmp.lt.s32.totalorder %s17, 3
    %p275 = pnand %p273, %p274
    %p276 = pneg %p275
    // Predicated region
    $region9: #{base_model_forward.1} parent=5 // pred_check
      _
    $region10: #{base_model_forward.1} parent=5 // pred_check_branch
      %278 = sbr.rel (%p275) target = $region12
    $region11: #{base_model_forward.1} parent=5 // pred_region
      %s279 = ssub.s32 %s17, 1
      // Predicated region
      $region13: #{base_model_forward.1} parent=11 // pred_check
        %p280 = pneg %p50
      $region14: #{base_model_forward.1} parent=11 // pred_check_branch
        %282 = sbr.rel (%p280) target = $region16
      $region15: #{base_model_forward.1} parent=11 // pred_region
        _
      $region16: #{base_model_forward.1} parent=11 // pred_fallthru
        _
      // Predicated region
      $region17: #{base_model_forward.1} parent=11 // pred_check
        %p283 = pneg %p71
      $region18: #{base_model_forward.1} parent=11 // pred_check_branch
        %285 = sbr.rel (%p283) target = $region20
      $region19: #{base_model_forward.1} parent=11 // pred_region
        _
      $region20: #{base_model_forward.1} parent=11 // pred_fallthru
        _
      // Predicated region
      $region21: #{base_model_forward.1} parent=11 // pred_check
        %p286 = pneg %p92
      $region22: #{base_model_forward.1} parent=11 // pred_check_branch
        %288 = sbr.rel (%p286) target = $region24
      $region23: #{base_model_forward.1} parent=11 // pred_region
        _
      $region24: #{base_model_forward.1} parent=11 // pred_fallthru
        _
      // Predicated region
      $region25: #{base_model_forward.1} parent=11 // pred_check
        %p289 = pneg %p113
      $region26: #{base_model_forward.1} parent=11 // pred_check_branch
        %291 = sbr.rel (%p289) target = $region28
      $region27: #{base_model_forward.1} parent=11 // pred_region
        _
      $region28: #{base_model_forward.1} parent=11 // pred_fallthru
        _
      // Predicated region
      $region29: #{base_model_forward.1} parent=11 // pred_check
        %p292 = pneg %p134
      $region30: #{base_model_forward.1} parent=11 // pred_check_branch
        %294 = sbr.rel (%p292) target = $region32
      $region31: #{base_model_forward.1} parent=11 // pred_region
        _
      $region32: #{base_model_forward.1} parent=11 // pred_fallthru
        _
      // Predicated region
      $region33: #{base_model_forward.1} parent=11 // pred_check
        %p295 = pneg %p160
      $region34: #{base_model_forward.1} parent=11 // pred_check_branch
        %297 = sbr.rel (%p295) target = $region36
      $region35: #{base_model_forward.1} parent=11 // pred_region
        %s298 = smul.u32 2, %s27
        %p299 = scmp.lt.s32.totalorder %s298, 1
        %s300 = scalar_select %p299, %s298, 1
        %s301 = scalar_lea.vmem %s5, %s300
        %s302 = smul.u32 2, %s27
      $region36: #{base_model_forward.1} parent=11 // pred_fallthru
        _
      // Predicated region
      $region37: #{base_model_forward.1} parent=11 // pred_check
        %p303 = pneg %p181
      $region38: #{base_model_forward.1} parent=11 // pred_check_branch
        %305 = sbr.rel (%p303) target = $region40
      $region39: #{base_model_forward.1} parent=11 // pred_region
        _
      $region40: #{base_model_forward.1} parent=11 // pred_fallthru
        _
      // Predicated region
      $region41: #{base_model_forward.1} parent=11 // pred_check
        %p306 = pneg %p202
      $region42: #{base_model_forward.1} parent=11 // pred_check_branch
        %308 = sbr.rel (%p306) target = $region44
      $region43: #{base_model_forward.1} parent=11 // pred_region
        _
      $region44: #{base_model_forward.1} parent=11 // pred_fallthru
        _
      // Predicated region
      $region45: #{base_model_forward.1} parent=11 // pred_check
        %p309 = pneg %p223
      $region46: #{base_model_forward.1} parent=11 // pred_check_branch
        %311 = sbr.rel (%p309) target = $region48
      $region47: #{base_model_forward.1} parent=11 // pred_region
        _
      $region48: #{base_model_forward.1} parent=11 // pred_fallthru
        _
    $region12: #{base_model_forward.1} parent=5 // pred_fallthru
      _
    %p312 = scmp.lt.s32.totalorder %s17, 2
    // Predicated region
    $region49: #{base_model_forward.1} parent=5 // pred_check
      %p313 = pneg %p312
    $region50: #{base_model_forward.1} parent=5 // pred_check_branch
      %315 = sbr.rel (%p313) target = $region52
    $region51: #{base_model_forward.1} parent=5 // pred_region
      _
    $region52: #{base_model_forward.1} parent=5 // pred_fallthru
      _
    %p316 = scmp.le.s32.totalorder 1, %s17
    %p317 = scmp.lt.s32.totalorder %s17, 3
    %p318 = pnand %p316, %p317
    %p319 = pneg %p318
    // Predicated region
    $region53: #{base_model_forward.1} parent=5 // pred_check
      _
    $region54: #{base_model_forward.1} parent=5 // pred_check_branch
      %321 = sbr.rel (%p318) target = $region56
    $region55: #{base_model_forward.1} parent=5 // pred_region
      %s322 = ssub.s32 %s17, 1
      %p323 = pneg %p50
      %p324 = pneg %p47
      %p325 = pneg %p71
      %p326 = pneg %p68
      %p327 = pneg %p92
      %p328 = pneg %p89
      %p329 = pneg %p113
      %p330 = pneg %p110
      %p331 = pneg %p134
      %p332 = pneg %p131
      %s333 = smul.u32 2, %s27
      %p334 = scmp.lt.s32.totalorder %s333, 1
      %s335 = scalar_select %p334, %s333, 1
      %s336 = scalar_lea.vmem %s5, %s335
      %p337 = pneg %p160
      %p338 = pneg %p157
      %p339 = pneg %p181
      %p340 = pneg %p178
      %p341 = pneg %p202
      %p342 = pneg %p199
      %p343 = pneg %p223
      %p344 = pneg %p220
      %p345 = pneg %p244
      %p346 = pneg %p241
      %p347 = pneg %p265
      %p348 = pneg %p262
      %s349 = smul.u32 2, %s27
      %p350 = scmp.lt.s32.totalorder %s349, 1
      %s351 = scalar_select %p350, %s349, 1
      %s352 = scalar_lea.vmem %s5, %s351
      %s353 = smul.u32 2, %s27
      %s355 = smul.u32 %s27, 256
      %p356 = scmp.eq.s32.totalorder %s26, 0
      // Predicated region
      $region57: #{base_model_forward.1} parent=55 // pred_check
        %p357 = pneg %p356
      $region58: #{base_model_forward.1} parent=55 // pred_check_branch
        %359 = sbr.rel (%p357) target = $region60
      $region59: #{base_model_forward.1} parent=55 // pred_region
        %s360 = sshra.s32 %s355, 3
        %s361 = sand.u32 %s355, 7
        %s362 = smul.u32 %s360, 2
        %s363 = smul.addr %s362, 4
        %s364 = scalar_lea.vmem %s0, %s363
        %v365 = vld [vmem:[%s364] sm:$0xff]
        %v366 = vld [vmem:[%s364 + $0x8] sm:$0xff]
        %v367 = vld [vmem:[%s364 + $0x10] sm:$0xff]
        %v368 = vld [vmem:[%s364 + $0x18] sm:$0xff]
        %v369 = vld [vmem:[%s364 + $0x20] sm:$0xff]
        %v370 = vld [vmem:[%s364 + $0x28] sm:$0xff]
        %v371 = vld [vmem:[%s364 + $0x30] sm:$0xff]
        %v372 = vld [vmem:[%s364 + $0x38] sm:$0xff]
        %v373 = vld [vmem:[%s364 + $0x40] sm:$0xff]
        %v374 = vld [vmem:[%s364 + $0x48] sm:$0xff]
        %v375 = vld [vmem:[%s364 + $0x50] sm:$0xff]
        %v376 = vld [vmem:[%s364 + $0x58] sm:$0xff]
        %v377 = vld [vmem:[%s364 + $0x60] sm:$0xff]
        %v378 = vld [vmem:[%s364 + $0x68] sm:$0xff]
        %v379 = vld [vmem:[%s364 + $0x70] sm:$0xff]
        %v380 = vld [vmem:[%s364 + $0x78] sm:$0xff]
        %v381 = vld [vmem:[%s364 + $0x80] sm:$0xff]
        %v382 = vld [vmem:[%s364 + $0x88] sm:$0xff]
        %v383 = vld [vmem:[%s364 + $0x90] sm:$0xff]
        %v384 = vld [vmem:[%s364 + $0x98] sm:$0xff]
        %v385 = vld [vmem:[%s364 + $0xa0] sm:$0xff]
        %v386 = vld [vmem:[%s364 + $0xa8] sm:$0xff]
        %v387 = vld [vmem:[%s364 + $0xb0] sm:$0xff]
        %v388 = vld [vmem:[%s364 + $0xb8] sm:$0xff]
        %v389 = vld [vmem:[%s364 + $0xc0] sm:$0xff]
        %v390 = vld [vmem:[%s364 + $0xc8] sm:$0xff]
        %v391 = vld [vmem:[%s364 + $0xd0] sm:$0xff]
        %v392 = vld [vmem:[%s364 + $0xd8] sm:$0xff]
        %v393 = vld [vmem:[%s364 + $0xe0] sm:$0xff]
        %v394 = vld [vmem:[%s364 + $0xe8] sm:$0xff]
        %v395 = vld [vmem:[%s364 + $0xf0] sm:$0xff]
        %v396 = vld [vmem:[%s364 + $0xf8] sm:$0xff]
        %v397 = vld [vmem:[%s1] sm:$0xf]
        %v398 = vld [vmem:[%s1 + $0x4] sm:$0xf]
        %v399 = vld [vmem:[%s1 + $0x8] sm:$0xf]
        %v400 = vld [vmem:[%s1 + $0xc] sm:$0xf]
        %v401 = vld [vmem:[%s1 + $0x10] sm:$0xf]
        %v402 = vld [vmem:[%s1 + $0x14] sm:$0xf]
        %v403 = vld [vmem:[%s1 + $0x18] sm:$0xf]
        %v404 = vld [vmem:[%s1 + $0x1c] sm:$0xf]
        %v405 = vld [vmem:[%s1 + $0x20] sm:$0xf]
        %v406 = vld [vmem:[%s1 + $0x24] sm:$0xf]
        %v407 = vld [vmem:[%s1 + $0x28] sm:$0xf]
        %v408 = vld [vmem:[%s1 + $0x2c] sm:$0xf]
        %v409 = vld [vmem:[%s1 + $0x30] sm:$0xf]
        %v410 = vld [vmem:[%s1 + $0x34] sm:$0xf]
        %v411 = vld [vmem:[%s1 + $0x38] sm:$0xf]
        %v412 = vld [vmem:[%s1 + $0x3c] sm:$0xf]
        %v413 = vld [vmem:[%s1 + $0x40] sm:$0xf]
        %v414 = vld [vmem:[%s1 + $0x44] sm:$0xf]
        %v415 = vld [vmem:[%s1 + $0x48] sm:$0xf]
        %v416 = vld [vmem:[%s1 + $0x4c] sm:$0xf]
        %v417 = vld [vmem:[%s1 + $0x50] sm:$0xf]
        %v418 = vld [vmem:[%s1 + $0x54] sm:$0xf]
        %v419 = vld [vmem:[%s1 + $0x58] sm:$0xf]
        %v420 = vld [vmem:[%s1 + $0x5c] sm:$0xf]
        %v421 = vld [vmem:[%s1 + $0x60] sm:$0xf]
        %v422 = vld [vmem:[%s1 + $0x64] sm:$0xf]
        %v423 = vld [vmem:[%s1 + $0x68] sm:$0xf]
        %v424 = vld [vmem:[%s1 + $0x6c] sm:$0xf]
        %v425 = vld [vmem:[%s1 + $0x70] sm:$0xf]
        %v426 = vld [vmem:[%s1 + $0x74] sm:$0xf]
        %v427 = vld [vmem:[%s1 + $0x78] sm:$0xf]
        %v428 = vld [vmem:[%s1 + $0x7c] sm:$0xf]
        %v429 = vld [vmem:[%s2] sm:$0x1]
        %v431 = vlaneseq
        %v432 = vshrl.u32 %v431, 7
        %v433 = vsub.s32 0, %v432
        %v434 = vrot.slane %v429, %v433
        %v468 = vunpack.c.l.b16 %v365
        %v469 = vunpack.c.h.b16 %v365
        %v470 = vunpack.c.l.b16 %v366
        %v471 = vunpack.c.h.b16 %v366
        %v472 = vunpack.c.l.b16 %v367
        %v473 = vunpack.c.h.b16 %v367
        %v474 = vunpack.c.l.b16 %v368
        %v475 = vunpack.c.h.b16 %v368
        %v476 = vunpack.c.l.b16 %v369
        %v477 = vunpack.c.h.b16 %v369
        %v478 = vunpack.c.l.b16 %v370
        %v479 = vunpack.c.h.b16 %v370
        %v480 = vunpack.c.l.b16 %v371
        %v481 = vunpack.c.h.b16 %v371
        %v482 = vunpack.c.l.b16 %v372
        %v483 = vunpack.c.h.b16 %v372
        %v484 = vunpack.c.l.b16 %v373
        %v485 = vunpack.c.h.b16 %v373
        %v486 = vunpack.c.l.b16 %v374
        %v487 = vunpack.c.h.b16 %v374
        %v488 = vunpack.c.l.b16 %v375
        %v489 = vunpack.c.h.b16 %v375
        %v490 = vunpack.c.l.b16 %v376
        %v491 = vunpack.c.h.b16 %v376
        %v492 = vunpack.c.l.b16 %v377
        %v493 = vunpack.c.h.b16 %v377
        %v494 = vunpack.c.l.b16 %v378
        %v495 = vunpack.c.h.b16 %v378
        %v496 = vunpack.c.l.b16 %v379
        %v497 = vunpack.c.h.b16 %v379
        %v498 = vunpack.c.l.b16 %v380
        %v499 = vunpack.c.h.b16 %v380
        %v500 = vunpack.c.l.b16 %v381
        %v501 = vunpack.c.h.b16 %v381
        %v502 = vunpack.c.l.b16 %v382
        %v503 = vunpack.c.h.b16 %v382
        %v504 = vunpack.c.l.b16 %v383
        %v505 = vunpack.c.h.b16 %v383
        %v506 = vunpack.c.l.b16 %v384
        %v507 = vunpack.c.h.b16 %v384
        %v508 = vunpack.c.l.b16 %v385
        %v509 = vunpack.c.h.b16 %v385
        %v510 = vunpack.c.l.b16 %v386
        %v511 = vunpack.c.h.b16 %v386
        %v512 = vunpack.c.l.b16 %v387
        %v513 = vunpack.c.h.b16 %v387
        %v514 = vunpack.c.l.b16 %v388
        %v515 = vunpack.c.h.b16 %v388
        %v516 = vunpack.c.l.b16 %v389
        %v517 = vunpack.c.h.b16 %v389
        %v518 = vunpack.c.l.b16 %v390
        %v519 = vunpack.c.h.b16 %v390
        %v520 = vunpack.c.l.b16 %v391
        %v521 = vunpack.c.h.b16 %v391
        %v522 = vunpack.c.l.b16 %v392
        %v523 = vunpack.c.h.b16 %v392
        %v524 = vunpack.c.l.b16 %v393
        %v525 = vunpack.c.h.b16 %v393
        %v526 = vunpack.c.l.b16 %v394
        %v527 = vunpack.c.h.b16 %v394
        %v528 = vunpack.c.l.b16 %v395
        %v529 = vunpack.c.h.b16 %v395
        %v530 = vunpack.c.l.b16 %v396
        %v531 = vunpack.c.h.b16 %v396
        %v532 = vpack.c.b16 %v470, %v468
        %v533 = vpack.c.b16 %v471, %v469
        %v534 = vpack.c.b16 %v474, %v472
        %v535 = vpack.c.b16 %v475, %v473
        %v536 = vpack.c.b16 %v478, %v476
        %v537 = vpack.c.b16 %v479, %v477
        %v538 = vpack.c.b16 %v482, %v480
        %v539 = vpack.c.b16 %v483, %v481
        %v540 = vpack.c.b16 %v486, %v484
        %v541 = vpack.c.b16 %v487, %v485
        %v542 = vpack.c.b16 %v490, %v488
        %v543 = vpack.c.b16 %v491, %v489
        %v544 = vpack.c.b16 %v494, %v492
        %v545 = vpack.c.b16 %v495, %v493
        %v546 = vpack.c.b16 %v498, %v496
        %v547 = vpack.c.b16 %v499, %v497
        %v548 = vpack.c.b16 %v502, %v500
        %v549 = vpack.c.b16 %v503, %v501
        %v550 = vpack.c.b16 %v506, %v504
        %v551 = vpack.c.b16 %v507, %v505
        %v552 = vpack.c.b16 %v510, %v508
        %v553 = vpack.c.b16 %v511, %v509
        %v554 = vpack.c.b16 %v514, %v512
        %v555 = vpack.c.b16 %v515, %v513
        %v556 = vpack.c.b16 %v518, %v516
        %v557 = vpack.c.b16 %v519, %v517
        %v558 = vpack.c.b16 %v522, %v520
        %v559 = vpack.c.b16 %v523, %v521
        %v560 = vpack.c.b16 %v526, %v524
        %v561 = vpack.c.b16 %v527, %v525
        %v562 = vpack.c.b16 %v530, %v528
        %v563 = vpack.c.b16 %v531, %v529
        %v628 = vunpack.c.l.b16 %v397
        %v629 = vunpack.c.l.b16 %v398
        %v630 = vunpack.c.l.b16 %v399
        %v631 = vunpack.c.l.b16 %v400
        %v632 = vunpack.c.l.b16 %v401
        %v633 = vunpack.c.l.b16 %v402
        %v634 = vunpack.c.l.b16 %v403
        %v635 = vunpack.c.l.b16 %v404
        %v636 = vunpack.c.l.b16 %v405
        %v637 = vunpack.c.l.b16 %v406
        %v638 = vunpack.c.l.b16 %v407
        %v639 = vunpack.c.l.b16 %v408
        %v640 = vunpack.c.l.b16 %v409
        %v641 = vunpack.c.l.b16 %v410
        %v642 = vunpack.c.l.b16 %v411
        %v643 = vunpack.c.l.b16 %v412
        %v644 = vunpack.c.l.b16 %v413
        %v645 = vunpack.c.l.b16 %v414
        %v646 = vunpack.c.l.b16 %v415
        %v647 = vunpack.c.l.b16 %v416
        %v648 = vunpack.c.l.b16 %v417
        %v649 = vunpack.c.l.b16 %v418
        %v650 = vunpack.c.l.b16 %v419
        %v651 = vunpack.c.l.b16 %v420
        %v652 = vunpack.c.l.b16 %v421
        %v653 = vunpack.c.l.b16 %v422
        %v654 = vunpack.c.l.b16 %v423
        %v655 = vunpack.c.l.b16 %v424
        %v656 = vunpack.c.l.b16 %v425
        %v657 = vunpack.c.l.b16 %v426
        %v658 = vunpack.c.l.b16 %v427
        %v659 = vunpack.c.l.b16 %v428
        %v660 = vpack.c.b16 %v629, %v628
        %v661 = vpack.c.b16 %v631, %v630
        %v662 = vpack.c.b16 %v633, %v632
        %v663 = vpack.c.b16 %v635, %v634
        %v664 = vpack.c.b16 %v637, %v636
        %v665 = vpack.c.b16 %v639, %v638
        %v666 = vpack.c.b16 %v641, %v640
        %v667 = vpack.c.b16 %v643, %v642
        %v668 = vpack.c.b16 %v645, %v644
        %v669 = vpack.c.b16 %v647, %v646
        %v670 = vpack.c.b16 %v649, %v648
        %v671 = vpack.c.b16 %v651, %v650
        %v672 = vpack.c.b16 %v653, %v652
        %v673 = vpack.c.b16 %v655, %v654
        %v674 = vpack.c.b16 %v657, %v656
        %v675 = vpack.c.b16 %v659, %v658
        %692 = vmatprep.subr.bf16.mxu0 0
        %693 = vmatpush1.bf16.msra.mxu0 %v667
        %694 = vmatprep.subr.bf16.mxu0 0
        %695 = vmatpush1.bf16.msra.mxu0 %v666
        %696 = vmatprep.subr.bf16.mxu0 0
        %697 = vmatpush1.bf16.msra.mxu0 %v665
        %698 = vmatprep.subr.bf16.mxu0 0
        %699 = vmatpush1.bf16.msra.mxu0 %v664
        %700 = vmatprep.subr.bf16.mxu0 0
        %701 = vmatpush1.bf16.msra.mxu0 %v663
        %702 = vmatprep.subr.bf16.mxu0 0
        %703 = vmatpush1.bf16.msra.mxu0 %v662
        %704 = vmatprep.subr.bf16.mxu0 0
        %705 = vmatpush1.bf16.msra.mxu0 %v661
        %706 = vmatprep.subr.bf16.mxu0 0
        %707 = vmatpush1.bf16.msra.mxu0 %v660
        %708 = vmatprep.subr.bf16.mxu0 0
        %709 = vmatpush2.bf16.msra.mxu0 %v675
        %710 = vmatprep.subr.bf16.mxu0 0
        %711 = vmatpush2.bf16.msra.mxu0 %v674
        %712 = vmatprep.subr.bf16.mxu0 0
        %713 = vmatpush2.bf16.msra.mxu0 %v673
        %714 = vmatprep.subr.bf16.mxu0 0
        %715 = vmatpush2.bf16.msra.mxu0 %v672
        %716 = vmatprep.subr.bf16.mxu0 0
        %717 = vmatpush2.bf16.msra.mxu0 %v671
        %718 = vmatprep.subr.bf16.mxu0 0
        %719 = vmatpush2.bf16.msra.mxu0 %v670
        %720 = vmatprep.subr.bf16.mxu0 0
        %721 = vmatpush2.bf16.msra.mxu0 %v669
        %722 = vmatprep.subr.bf16.mxu0 0
        %723 = vmatpush2.bf16.msra.mxu0 %v668
        %724 = vmatprep.mubr.bf16.mxu0 %v533
        %725 = vmatmul.mubr.bf16.gmra.mxu0 %v532
        %v726 = vpop.f32.mrf.mxu0
        %v727 = vadd.f32 %v434, %v726
        %v728 = vpop.f32.mrf.mxu0
        %v729 = vpop.f32.mrf.mxu0
        %v730 = vadd.f32 %v434, %v729
        %v731 = vpop.f32.mrf.mxu0
        %732 = vmatprep.mubr.bf16.mxu0 %v535
        %733 = vmatmul.mubr.bf16.gmra.mxu0 %v534
        %v734 = vpop.f32.mrf.mxu0
        %v735 = vadd.f32 %v434, %v734
        %v736 = vpop.f32.mrf.mxu0
        %v737 = vpop.f32.mrf.mxu0
        %v738 = vadd.f32 %v434, %v737
        %v739 = vpop.f32.mrf.mxu0
        %740 = vmatprep.mubr.bf16.mxu0 %v537
        %741 = vmatmul.mubr.bf16.gmra.mxu0 %v536
        %v742 = vpop.f32.mrf.mxu0
        %v743 = vadd.f32 %v434, %v742
        %v744 = vpop.f32.mrf.mxu0
        %v745 = vpop.f32.mrf.mxu0
        %v746 = vadd.f32 %v434, %v745
        %v747 = vpop.f32.mrf.mxu0
        %748 = vmatprep.mubr.bf16.mxu0 %v539
        %749 = vmatmul.mubr.bf16.gmra.mxu0 %v538
        %v750 = vpop.f32.mrf.mxu0
        %v751 = vadd.f32 %v434, %v750
        %v752 = vpop.f32.mrf.mxu0
        %v753 = vpop.f32.mrf.mxu0
        %v754 = vadd.f32 %v434, %v753
        %v755 = vpop.f32.mrf.mxu0
        %756 = vmatprep.mubr.bf16.mxu0 %v541
        %757 = vmatmul.mubr.bf16.gmra.mxu0 %v540
        %v758 = vpop.f32.mrf.mxu0
        %v759 = vadd.f32 %v434, %v758
        %v760 = vpop.f32.mrf.mxu0
        %v761 = vpop.f32.mrf.mxu0
        %v762 = vadd.f32 %v434, %v761
        %v763 = vpop.f32.mrf.mxu0
        %764 = vmatprep.mubr.bf16.mxu0 %v543
        %765 = vmatmul.mubr.bf16.gmra.mxu0 %v542
        %v766 = vpop.f32.mrf.mxu0
        %v767 = vadd.f32 %v434, %v766
        %v768 = vpop.f32.mrf.mxu0
        %v769 = vpop.f32.mrf.mxu0
        %v770 = vadd.f32 %v434, %v769
        %v771 = vpop.f32.mrf.mxu0
        %772 = vmatprep.mubr.bf16.mxu0 %v545
        %773 = vmatmul.mubr.bf16.gmra.mxu0 %v544
        %v774 = vpop.f32.mrf.mxu0
        %v775 = vadd.f32 %v434, %v774
        %v776 = vpop.f32.mrf.mxu0
        %v777 = vpop.f32.mrf.mxu0
        %v778 = vadd.f32 %v434, %v777
        %v779 = vpop.f32.mrf.mxu0
        %780 = vmatprep.mubr.bf16.mxu0 %v547
        %781 = vmatmul.mubr.bf16.gmra.mxu0 %v546
        %v782 = vpop.f32.mrf.mxu0
        %v783 = vadd.f32 %v434, %v782
        %v784 = vpop.f32.mrf.mxu0
        %v785 = vpop.f32.mrf.mxu0
        %v786 = vadd.f32 %v434, %v785
        %v787 = vpop.f32.mrf.mxu0
        %788 = vmatprep.mubr.bf16.mxu0 %v549
        %789 = vmatmul.mubr.bf16.gmra.mxu0 %v548
        %v790 = vpop.f32.mrf.mxu0
        %v791 = vadd.f32 %v434, %v790
        %v792 = vpop.f32.mrf.mxu0
        %v793 = vpop.f32.mrf.mxu0
        %v794 = vadd.f32 %v434, %v793
        %v795 = vpop.f32.mrf.mxu0
        %796 = vmatprep.mubr.bf16.mxu0 %v551
        %797 = vmatmul.mubr.bf16.gmra.mxu0 %v550
        %v798 = vpop.f32.mrf.mxu0
        %v799 = vadd.f32 %v434, %v798
        %v800 = vpop.f32.mrf.mxu0
        %v801 = vpop.f32.mrf.mxu0
        %v802 = vadd.f32 %v434, %v801
        %v803 = vpop.f32.mrf.mxu0
        %804 = vmatprep.mubr.bf16.mxu0 %v553
        %805 = vmatmul.mubr.bf16.gmra.mxu0 %v552
        %v806 = vpop.f32.mrf.mxu0
        %v807 = vadd.f32 %v434, %v806
        %v808 = vpop.f32.mrf.mxu0
        %v809 = vpop.f32.mrf.mxu0
        %v810 = vadd.f32 %v434, %v809
        %v811 = vpop.f32.mrf.mxu0
        %812 = vmatprep.mubr.bf16.mxu0 %v555
        %813 = vmatmul.mubr.bf16.gmra.mxu0 %v554
        %v814 = vpop.f32.mrf.mxu0
        %v815 = vadd.f32 %v434, %v814
        %v816 = vpop.f32.mrf.mxu0
        %v817 = vpop.f32.mrf.mxu0
        %v818 = vadd.f32 %v434, %v817
        %v819 = vpop.f32.mrf.mxu0
        %820 = vmatprep.mubr.bf16.mxu0 %v557
        %821 = vmatmul.mubr.bf16.gmra.mxu0 %v556
        %v822 = vpop.f32.mrf.mxu0
        %v823 = vadd.f32 %v434, %v822
        %v824 = vpop.f32.mrf.mxu0
        %v825 = vpop.f32.mrf.mxu0
        %v826 = vadd.f32 %v434, %v825
        %v827 = vpop.f32.mrf.mxu0
        %828 = vmatprep.mubr.bf16.mxu0 %v559
        %829 = vmatmul.mubr.bf16.gmra.mxu0 %v558
        %v830 = vpop.f32.mrf.mxu0
        %v831 = vadd.f32 %v434, %v830
        %v832 = vpop.f32.mrf.mxu0
        %v833 = vpop.f32.mrf.mxu0
        %v834 = vadd.f32 %v434, %v833
        %v835 = vpop.f32.mrf.mxu0
        %836 = vmatprep.mubr.bf16.mxu0 %v561
        %837 = vmatmul.mubr.bf16.gmra.mxu0 %v560
        %v838 = vpop.f32.mrf.mxu0
        %v839 = vadd.f32 %v434, %v838
        %v840 = vpop.f32.mrf.mxu0
        %v841 = vpop.f32.mrf.mxu0
        %v842 = vadd.f32 %v434, %v841
        %v843 = vpop.f32.mrf.mxu0
        %844 = vmatprep.mubr.bf16.mxu0 %v563
        %845 = vmatmul.mubr.bf16.gmra.mxu0 %v562
        %v846 = vpop.f32.mrf.mxu0
        %v847 = vadd.f32 %v434, %v846
        %v848 = vpop.f32.mrf.mxu0
        %v849 = vpop.f32.mrf.mxu0
        %v850 = vadd.f32 %v434, %v849
        %v851 = vpop.f32.mrf.mxu0
        %852 = vdwg.mxu0
        %v853 = vmax.f32 %v727, 0.0
        %v854 = vmax.f32 %v730, 0.0
        %v855 = vmax.f32 %v735, 0.0
        %v856 = vmax.f32 %v738, 0.0
        %v857 = vmax.f32 %v743, 0.0
        %v858 = vmax.f32 %v746, 0.0
        %v859 = vmax.f32 %v751, 0.0
        %v860 = vmax.f32 %v754, 0.0
        %v861 = vmax.f32 %v759, 0.0
        %v862 = vmax.f32 %v762, 0.0
        %v863 = vmax.f32 %v767, 0.0
        %v864 = vmax.f32 %v770, 0.0
        %v865 = vmax.f32 %v775, 0.0
        %v866 = vmax.f32 %v778, 0.0
        %v867 = vmax.f32 %v783, 0.0
        %v868 = vmax.f32 %v786, 0.0
        %v869 = vmax.f32 %v791, 0.0
        %v870 = vmax.f32 %v794, 0.0
        %v871 = vmax.f32 %v799, 0.0
        %v872 = vmax.f32 %v802, 0.0
        %v873 = vmax.f32 %v807, 0.0
        %v874 = vmax.f32 %v810, 0.0
        %v875 = vmax.f32 %v815, 0.0
        %v876 = vmax.f32 %v818, 0.0
        %v877 = vmax.f32 %v823, 0.0
        %v878 = vmax.f32 %v826, 0.0
        %v879 = vmax.f32 %v831, 0.0
        %v880 = vmax.f32 %v834, 0.0
        %v881 = vmax.f32 %v839, 0.0
        %v882 = vmax.f32 %v842, 0.0
        %v883 = vmax.f32 %v847, 0.0
        %v884 = vmax.f32 %v850, 0.0
        %v885 = vpack.c.bf16 %v854, %v853
        %v886 = vpack.c.bf16 %v856, %v855
        %v887 = vpack.c.bf16 %v858, %v857
        %v888 = vpack.c.bf16 %v860, %v859
        %v889 = vpack.c.bf16 %v862, %v861
        %v890 = vpack.c.bf16 %v864, %v863
        %v891 = vpack.c.bf16 %v866, %v865
        %v892 = vpack.c.bf16 %v868, %v867
        %v893 = vpack.c.bf16 %v870, %v869
        %v894 = vpack.c.bf16 %v872, %v871
        %v895 = vpack.c.bf16 %v874, %v873
        %v896 = vpack.c.bf16 %v876, %v875
        %v897 = vpack.c.bf16 %v878, %v877
        %v898 = vpack.c.bf16 %v880, %v879
        %v899 = vpack.c.bf16 %v882, %v881
        %v900 = vpack.c.bf16 %v884, %v883
        %v917 = vunpack.c.l.b16 %v885
        %v918 = vunpack.c.h.b16 %v885
        %v919 = vunpack.c.l.b16 %v886
        %v920 = vunpack.c.h.b16 %v886
        %v921 = vunpack.c.l.b16 %v887
        %v922 = vunpack.c.h.b16 %v887
        %v923 = vunpack.c.l.b16 %v888
        %v924 = vunpack.c.h.b16 %v888
        %v925 = vunpack.c.l.b16 %v889
        %v926 = vunpack.c.h.b16 %v889
        %v927 = vunpack.c.l.b16 %v890
        %v928 = vunpack.c.h.b16 %v890
        %v929 = vunpack.c.l.b16 %v891
        %v930 = vunpack.c.h.b16 %v891
        %v931 = vunpack.c.l.b16 %v892
        %v932 = vunpack.c.h.b16 %v892
        %v933 = vunpack.c.l.b16 %v893
        %v934 = vunpack.c.h.b16 %v893
        %v935 = vunpack.c.l.b16 %v894
        %v936 = vunpack.c.h.b16 %v894
        %v937 = vunpack.c.l.b16 %v895
        %v938 = vunpack.c.h.b16 %v895
        %v939 = vunpack.c.l.b16 %v896
        %v940 = vunpack.c.h.b16 %v896
        %v941 = vunpack.c.l.b16 %v897
        %v942 = vunpack.c.h.b16 %v897
        %v943 = vunpack.c.l.b16 %v898
        %v944 = vunpack.c.h.b16 %v898
        %v945 = vunpack.c.l.b16 %v899
        %v946 = vunpack.c.h.b16 %v899
        %v947 = vunpack.c.l.b16 %v900
        %v948 = vunpack.c.h.b16 %v900
        %v949 = vpack.c.b16 %v917, %v917
        %v950 = vpack.c.b16 %v918, %v918
        %v951 = vpack.c.b16 %v919, %v919
        %v952 = vpack.c.b16 %v920, %v920
        %v953 = vpack.c.b16 %v921, %v921
        %v954 = vpack.c.b16 %v922, %v922
        %v955 = vpack.c.b16 %v923, %v923
        %v956 = vpack.c.b16 %v924, %v924
        %v957 = vpack.c.b16 %v925, %v925
        %v958 = vpack.c.b16 %v926, %v926
        %v959 = vpack.c.b16 %v927, %v927
        %v960 = vpack.c.b16 %v928, %v928
        %v961 = vpack.c.b16 %v929, %v929
        %v962 = vpack.c.b16 %v930, %v930
        %v963 = vpack.c.b16 %v931, %v931
        %v964 = vpack.c.b16 %v932, %v932
        %v965 = vpack.c.b16 %v933, %v933
        %v966 = vpack.c.b16 %v934, %v934
        %v967 = vpack.c.b16 %v935, %v935
        %v968 = vpack.c.b16 %v936, %v936
        %v969 = vpack.c.b16 %v937, %v937
        %v970 = vpack.c.b16 %v938, %v938
        %v971 = vpack.c.b16 %v939, %v939
        %v972 = vpack.c.b16 %v940, %v940
        %v973 = vpack.c.b16 %v941, %v941
        %v974 = vpack.c.b16 %v942, %v942
        %v975 = vpack.c.b16 %v943, %v943
        %v976 = vpack.c.b16 %v944, %v944
        %v977 = vpack.c.b16 %v945, %v945
        %v978 = vpack.c.b16 %v946, %v946
        %v979 = vpack.c.b16 %v947, %v947
        %v980 = vpack.c.b16 %v948, %v948
        %s1013 = smul.addr %s360, 4
        %s1014 = scalar_lea.vmem [#allocation2], %s1013
        %1015 = vst [vmem:[%s1014] sm:$0xf] %v949
        %1016 = vst [vmem:[%s1014 + $0x4] sm:$0xf] %v950
        %1017 = vst [vmem:[%s1014 + $0x8] sm:$0xf] %v951
        %1018 = vst [vmem:[%s1014 + $0xc] sm:$0xf] %v952
        %1019 = vst [vmem:[%s1014 + $0x10] sm:$0xf] %v953
        %1020 = vst [vmem:[%s1014 + $0x14] sm:$0xf] %v954
        %1021 = vst [vmem:[%s1014 + $0x18] sm:$0xf] %v955
        %1022 = vst [vmem:[%s1014 + $0x1c] sm:$0xf] %v956
        %1023 = vst [vmem:[%s1014 + $0x20] sm:$0xf] %v957
        %1024 = vst [vmem:[%s1014 + $0x24] sm:$0xf] %v958
        %1025 = vst [vmem:[%s1014 + $0x28] sm:$0xf] %v959
        %1026 = vst [vmem:[%s1014 + $0x2c] sm:$0xf] %v960
        %1027 = vst [vmem:[%s1014 + $0x30] sm:$0xf] %v961
        %1028 = vst [vmem:[%s1014 + $0x34] sm:$0xf] %v962
        %1029 = vst [vmem:[%s1014 + $0x38] sm:$0xf] %v963
        %1030 = vst [vmem:[%s1014 + $0x3c] sm:$0xf] %v964
        %1031 = vst [vmem:[%s1014 + $0x40] sm:$0xf] %v965
        %1032 = vst [vmem:[%s1014 + $0x44] sm:$0xf] %v966
        %1033 = vst [vmem:[%s1014 + $0x48] sm:$0xf] %v967
        %1034 = vst [vmem:[%s1014 + $0x4c] sm:$0xf] %v968
        %1035 = vst [vmem:[%s1014 + $0x50] sm:$0xf] %v969
        %1036 = vst [vmem:[%s1014 + $0x54] sm:$0xf] %v970
        %1037 = vst [vmem:[%s1014 + $0x58] sm:$0xf] %v971
        %1038 = vst [vmem:[%s1014 + $0x5c] sm:$0xf] %v972
        %1039 = vst [vmem:[%s1014 + $0x60] sm:$0xf] %v973
        %1040 = vst [vmem:[%s1014 + $0x64] sm:$0xf] %v974
        %1041 = vst [vmem:[%s1014 + $0x68] sm:$0xf] %v975
        %1042 = vst [vmem:[%s1014 + $0x6c] sm:$0xf] %v976
        %1043 = vst [vmem:[%s1014 + $0x70] sm:$0xf] %v977
        %1044 = vst [vmem:[%s1014 + $0x74] sm:$0xf] %v978
        %1045 = vst [vmem:[%s1014 + $0x78] sm:$0xf] %v979
        %1046 = vst [vmem:[%s1014 + $0x7c] sm:$0xf] %v980
      $region60: #{base_model_forward.1} parent=55 // pred_fallthru
        _
      %p1047 = scmp.eq.s32.totalorder %s26, 1
      %p1048 = scmp.eq.s32.totalorder %s27, 0
      %p1049 = pnand %p1047, %p1048
      %p1050 = pneg %p1049
      // Predicated region
      $region61: #{base_model_forward.1} parent=55 // pred_check
        _
      $region62: #{base_model_forward.1} parent=55 // pred_check_branch
        %1052 = sbr.rel (%p1049) target = $region64
      $region63: #{base_model_forward.1} parent=55 // pred_region
        %1053 = vst [vmem:[#allocation3] sm:$0xff] 0.0
      $region64: #{base_model_forward.1} parent=55 // pred_fallthru
        _
      // Predicated region
      $region65: #{base_model_forward.1} parent=55 // pred_check
        %p1054 = pneg %p1047
      $region66: #{base_model_forward.1} parent=55 // pred_check_branch
        %1056 = sbr.rel (%p1054) target = $region68
      $region67: #{base_model_forward.1} parent=55 // pred_region
        %s1057 = sshra.s32 %s355, 3
        %s1058 = sand.u32 %s355, 7
        %s1059 = smul.u32 %s1057, 2
        %s1060 = smul.addr %s1059, 4
        %s1061 = scalar_lea.vmem %s0, %s1060
        %v1062 = vld [vmem:[%s1061] sm:$0xff]
        %v1063 = vld [vmem:[%s1061 + $0x8] sm:$0xff]
        %v1064 = vld [vmem:[%s1061 + $0x10] sm:$0xff]
        %v1065 = vld [vmem:[%s1061 + $0x18] sm:$0xff]
        %v1066 = vld [vmem:[%s1061 + $0x20] sm:$0xff]
        %v1067 = vld [vmem:[%s1061 + $0x28] sm:$0xff]
        %v1068 = vld [vmem:[%s1061 + $0x30] sm:$0xff]
        %v1069 = vld [vmem:[%s1061 + $0x38] sm:$0xff]
        %v1070 = vld [vmem:[%s1061 + $0x40] sm:$0xff]
        %v1071 = vld [vmem:[%s1061 + $0x48] sm:$0xff]
        %v1072 = vld [vmem:[%s1061 + $0x50] sm:$0xff]
        %v1073 = vld [vmem:[%s1061 + $0x58] sm:$0xff]
        %v1074 = vld [vmem:[%s1061 + $0x60] sm:$0xff]
        %v1075 = vld [vmem:[%s1061 + $0x68] sm:$0xff]
        %v1076 = vld [vmem:[%s1061 + $0x70] sm:$0xff]
        %v1077 = vld [vmem:[%s1061 + $0x78] sm:$0xff]
        %v1078 = vld [vmem:[%s1061 + $0x80] sm:$0xff]
        %v1079 = vld [vmem:[%s1061 + $0x88] sm:$0xff]
        %v1080 = vld [vmem:[%s1061 + $0x90] sm:$0xff]
        %v1081 = vld [vmem:[%s1061 + $0x98] sm:$0xff]
        %v1082 = vld [vmem:[%s1061 + $0xa0] sm:$0xff]
        %v1083 = vld [vmem:[%s1061 + $0xa8] sm:$0xff]
        %v1084 = vld [vmem:[%s1061 + $0xb0] sm:$0xff]
        %v1085 = vld [vmem:[%s1061 + $0xb8] sm:$0xff]
        %v1086 = vld [vmem:[%s1061 + $0xc0] sm:$0xff]
        %v1087 = vld [vmem:[%s1061 + $0xc8] sm:$0xff]
        %v1088 = vld [vmem:[%s1061 + $0xd0] sm:$0xff]
        %v1089 = vld [vmem:[%s1061 + $0xd8] sm:$0xff]
        %v1090 = vld [vmem:[%s1061 + $0xe0] sm:$0xff]
        %v1091 = vld [vmem:[%s1061 + $0xe8] sm:$0xff]
        %v1092 = vld [vmem:[%s1061 + $0xf0] sm:$0xff]
        %v1093 = vld [vmem:[%s1061 + $0xf8] sm:$0xff]
        %v1094 = vld [vmem:[#allocation2] sm:$0xf]
        %v1095 = vld [vmem:[#allocation2 + $0x4] sm:$0xf]
        %v1096 = vld [vmem:[#allocation2 + $0x8] sm:$0xf]
        %v1097 = vld [vmem:[#allocation2 + $0xc] sm:$0xf]
        %v1098 = vld [vmem:[#allocation2 + $0x10] sm:$0xf]
        %v1099 = vld [vmem:[#allocation2 + $0x14] sm:$0xf]
        %v1100 = vld [vmem:[#allocation2 + $0x18] sm:$0xf]
        %v1101 = vld [vmem:[#allocation2 + $0x1c] sm:$0xf]
        %v1102 = vld [vmem:[#allocation2 + $0x20] sm:$0xf]
        %v1103 = vld [vmem:[#allocation2 + $0x24] sm:$0xf]
        %v1104 = vld [vmem:[#allocation2 + $0x28] sm:$0xf]
        %v1105 = vld [vmem:[#allocation2 + $0x2c] sm:$0xf]
        %v1106 = vld [vmem:[#allocation2 + $0x30] sm:$0xf]
        %v1107 = vld [vmem:[#allocation2 + $0x34] sm:$0xf]
        %v1108 = vld [vmem:[#allocation2 + $0x38] sm:$0xf]
        %v1109 = vld [vmem:[#allocation2 + $0x3c] sm:$0xf]
        %v1110 = vld [vmem:[#allocation2 + $0x40] sm:$0xf]
        %v1111 = vld [vmem:[#allocation2 + $0x44] sm:$0xf]
        %v1112 = vld [vmem:[#allocation2 + $0x48] sm:$0xf]
        %v1113 = vld [vmem:[#allocation2 + $0x4c] sm:$0xf]
        %v1114 = vld [vmem:[#allocation2 + $0x50] sm:$0xf]
        %v1115 = vld [vmem:[#allocation2 + $0x54] sm:$0xf]
        %v1116 = vld [vmem:[#allocation2 + $0x58] sm:$0xf]
        %v1117 = vld [vmem:[#allocation2 + $0x5c] sm:$0xf]
        %v1118 = vld [vmem:[#allocation2 + $0x60] sm:$0xf]
        %v1119 = vld [vmem:[#allocation2 + $0x64] sm:$0xf]
        %v1120 = vld [vmem:[#allocation2 + $0x68] sm:$0xf]
        %v1121 = vld [vmem:[#allocation2 + $0x6c] sm:$0xf]
        %v1122 = vld [vmem:[#allocation2 + $0x70] sm:$0xf]
        %v1123 = vld [vmem:[#allocation2 + $0x74] sm:$0xf]
        %v1124 = vld [vmem:[#allocation2 + $0x78] sm:$0xf]
        %v1125 = vld [vmem:[#allocation2 + $0x7c] sm:$0xf]
        %v1158 = vunpack.c.l.b16 %v1062
        %v1159 = vunpack.c.h.b16 %v1062
        %v1160 = vunpack.c.l.b16 %v1063
        %v1161 = vunpack.c.h.b16 %v1063
        %v1162 = vunpack.c.l.b16 %v1064
        %v1163 = vunpack.c.h.b16 %v1064
        %v1164 = vunpack.c.l.b16 %v1065
        %v1165 = vunpack.c.h.b16 %v1065
        %v1166 = vunpack.c.l.b16 %v1066
        %v1167 = vunpack.c.h.b16 %v1066
        %v1168 = vunpack.c.l.b16 %v1067
        %v1169 = vunpack.c.h.b16 %v1067
        %v1170 = vunpack.c.l.b16 %v1068
        %v1171 = vunpack.c.h.b16 %v1068
        %v1172 = vunpack.c.l.b16 %v1069
        %v1173 = vunpack.c.h.b16 %v1069
        %v1174 = vunpack.c.l.b16 %v1070
        %v1175 = vunpack.c.h.b16 %v1070
        %v1176 = vunpack.c.l.b16 %v1071
        %v1177 = vunpack.c.h.b16 %v1071
        %v1178 = vunpack.c.l.b16 %v1072
        %v1179 = vunpack.c.h.b16 %v1072
        %v1180 = vunpack.c.l.b16 %v1073
        %v1181 = vunpack.c.h.b16 %v1073
        %v1182 = vunpack.c.l.b16 %v1074
        %v1183 = vunpack.c.h.b16 %v1074
        %v1184 = vunpack.c.l.b16 %v1075
        %v1185 = vunpack.c.h.b16 %v1075
        %v1186 = vunpack.c.l.b16 %v1076
        %v1187 = vunpack.c.h.b16 %v1076
        %v1188 = vunpack.c.l.b16 %v1077
        %v1189 = vunpack.c.h.b16 %v1077
        %v1190 = vunpack.c.l.b16 %v1078
        %v1191 = vunpack.c.h.b16 %v1078
        %v1192 = vunpack.c.l.b16 %v1079
        %v1193 = vunpack.c.h.b16 %v1079
        %v1194 = vunpack.c.l.b16 %v1080
        %v1195 = vunpack.c.h.b16 %v1080
        %v1196 = vunpack.c.l.b16 %v1081
        %v1197 = vunpack.c.h.b16 %v1081
        %v1198 = vunpack.c.l.b16 %v1082
        %v1199 = vunpack.c.h.b16 %v1082
        %v1200 = vunpack.c.l.b16 %v1083
        %v1201 = vunpack.c.h.b16 %v1083
        %v1202 = vunpack.c.l.b16 %v1084
        %v1203 = vunpack.c.h.b16 %v1084
        %v1204 = vunpack.c.l.b16 %v1085
        %v1205 = vunpack.c.h.b16 %v1085
        %v1206 = vunpack.c.l.b16 %v1086
        %v1207 = vunpack.c.h.b16 %v1086
        %v1208 = vunpack.c.l.b16 %v1087
        %v1209 = vunpack.c.h.b16 %v1087
        %v1210 = vunpack.c.l.b16 %v1088
        %v1211 = vunpack.c.h.b16 %v1088
        %v1212 = vunpack.c.l.b16 %v1089
        %v1213 = vunpack.c.h.b16 %v1089
        %v1214 = vunpack.c.l.b16 %v1090
        %v1215 = vunpack.c.h.b16 %v1090
        %v1216 = vunpack.c.l.b16 %v1091
        %v1217 = vunpack.c.h.b16 %v1091
        %v1218 = vunpack.c.l.b16 %v1092
        %v1219 = vunpack.c.h.b16 %v1092
        %v1220 = vunpack.c.l.b16 %v1093
        %v1221 = vunpack.c.h.b16 %v1093
        %v1222 = vpack.c.b16 %v1160, %v1158
        %v1223 = vpack.c.b16 %v1161, %v1159
        %v1224 = vpack.c.b16 %v1164, %v1162
        %v1225 = vpack.c.b16 %v1165, %v1163
        %v1226 = vpack.c.b16 %v1168, %v1166
        %v1227 = vpack.c.b16 %v1169, %v1167
        %v1228 = vpack.c.b16 %v1172, %v1170
        %v1229 = vpack.c.b16 %v1173, %v1171
        %v1230 = vpack.c.b16 %v1176, %v1174
        %v1231 = vpack.c.b16 %v1177, %v1175
        %v1232 = vpack.c.b16 %v1180, %v1178
        %v1233 = vpack.c.b16 %v1181, %v1179
        %v1234 = vpack.c.b16 %v1184, %v1182
        %v1235 = vpack.c.b16 %v1185, %v1183
        %v1236 = vpack.c.b16 %v1188, %v1186
        %v1237 = vpack.c.b16 %v1189, %v1187
        %v1238 = vpack.c.b16 %v1192, %v1190
        %v1239 = vpack.c.b16 %v1193, %v1191
        %v1240 = vpack.c.b16 %v1196, %v1194
        %v1241 = vpack.c.b16 %v1197, %v1195
        %v1242 = vpack.c.b16 %v1200, %v1198
        %v1243 = vpack.c.b16 %v1201, %v1199
        %v1244 = vpack.c.b16 %v1204, %v1202
        %v1245 = vpack.c.b16 %v1205, %v1203
        %v1246 = vpack.c.b16 %v1208, %v1206
        %v1247 = vpack.c.b16 %v1209, %v1207
        %v1248 = vpack.c.b16 %v1212, %v1210
        %v1249 = vpack.c.b16 %v1213, %v1211
        %v1250 = vpack.c.b16 %v1216, %v1214
        %v1251 = vpack.c.b16 %v1217, %v1215
        %v1252 = vpack.c.b16 %v1220, %v1218
        %v1253 = vpack.c.b16 %v1221, %v1219
        %v1318 = vunpack.c.l.b16 %v1094
        %v1319 = vunpack.c.l.b16 %v1095
        %v1320 = vunpack.c.l.b16 %v1096
        %v1321 = vunpack.c.l.b16 %v1097
        %v1322 = vunpack.c.l.b16 %v1098
        %v1323 = vunpack.c.l.b16 %v1099
        %v1324 = vunpack.c.l.b16 %v1100
        %v1325 = vunpack.c.l.b16 %v1101
        %v1326 = vunpack.c.l.b16 %v1102
        %v1327 = vunpack.c.l.b16 %v1103
        %v1328 = vunpack.c.l.b16 %v1104
        %v1329 = vunpack.c.l.b16 %v1105
        %v1330 = vunpack.c.l.b16 %v1106
        %v1331 = vunpack.c.l.b16 %v1107
        %v1332 = vunpack.c.l.b16 %v1108
        %v1333 = vunpack.c.l.b16 %v1109
        %v1334 = vunpack.c.l.b16 %v1110
        %v1335 = vunpack.c.l.b16 %v1111
        %v1336 = vunpack.c.l.b16 %v1112
        %v1337 = vunpack.c.l.b16 %v1113
        %v1338 = vunpack.c.l.b16 %v1114
        %v1339 = vunpack.c.l.b16 %v1115
        %v1340 = vunpack.c.l.b16 %v1116
        %v1341 = vunpack.c.l.b16 %v1117
        %v1342 = vunpack.c.l.b16 %v1118
        %v1343 = vunpack.c.l.b16 %v1119
        %v1344 = vunpack.c.l.b16 %v1120
        %v1345 = vunpack.c.l.b16 %v1121
        %v1346 = vunpack.c.l.b16 %v1122
        %v1347 = vunpack.c.l.b16 %v1123
        %v1348 = vunpack.c.l.b16 %v1124
        %v1349 = vunpack.c.l.b16 %v1125
        %v1350 = vpack.c.b16 %v1319, %v1318
        %v1351 = vpack.c.b16 %v1321, %v1320
        %v1352 = vpack.c.b16 %v1323, %v1322
        %v1353 = vpack.c.b16 %v1325, %v1324
        %v1354 = vpack.c.b16 %v1327, %v1326
        %v1355 = vpack.c.b16 %v1329, %v1328
        %v1356 = vpack.c.b16 %v1331, %v1330
        %v1357 = vpack.c.b16 %v1333, %v1332
        %v1358 = vpack.c.b16 %v1335, %v1334
        %v1359 = vpack.c.b16 %v1337, %v1336
        %v1360 = vpack.c.b16 %v1339, %v1338
        %v1361 = vpack.c.b16 %v1341, %v1340
        %v1362 = vpack.c.b16 %v1343, %v1342
        %v1363 = vpack.c.b16 %v1345, %v1344
        %v1364 = vpack.c.b16 %v1347, %v1346
        %v1365 = vpack.c.b16 %v1349, %v1348
        %1382 = vmatprep.subr.bf16.mxu0 0
        %1383 = vmatpush1.bf16.msra.mxu0 %v1357
        %1384 = vmatprep.subr.bf16.mxu0 0
        %1385 = vmatpush1.bf16.msra.mxu0 %v1356
        %1386 = vmatprep.subr.bf16.mxu0 0
        %1387 = vmatpush1.bf16.msra.mxu0 %v1355
        %1388 = vmatprep.subr.bf16.mxu0 0
        %1389 = vmatpush1.bf16.msra.mxu0 %v1354
        %1390 = vmatprep.subr.bf16.mxu0 0
        %1391 = vmatpush1.bf16.msra.mxu0 %v1353
        %1392 = vmatprep.subr.bf16.mxu0 0
        %1393 = vmatpush1.bf16.msra.mxu0 %v1352
        %1394 = vmatprep.subr.bf16.mxu0 0
        %1395 = vmatpush1.bf16.msra.mxu0 %v1351
        %1396 = vmatprep.subr.bf16.mxu0 0
        %1397 = vmatpush1.bf16.msra.mxu0 %v1350
        %1398 = vmatprep.subr.bf16.mxu0 0
        %1399 = vmatpush2.bf16.msra.mxu0 %v1365
        %1400 = vmatprep.subr.bf16.mxu0 0
        %1401 = vmatpush2.bf16.msra.mxu0 %v1364
        %1402 = vmatprep.subr.bf16.mxu0 0
        %1403 = vmatpush2.bf16.msra.mxu0 %v1363
        %1404 = vmatprep.subr.bf16.mxu0 0
        %1405 = vmatpush2.bf16.msra.mxu0 %v1362
        %1406 = vmatprep.subr.bf16.mxu0 0
        %1407 = vmatpush2.bf16.msra.mxu0 %v1361
        %1408 = vmatprep.subr.bf16.mxu0 0
        %1409 = vmatpush2.bf16.msra.mxu0 %v1360
        %1410 = vmatprep.subr.bf16.mxu0 0
        %1411 = vmatpush2.bf16.msra.mxu0 %v1359
        %1412 = vmatprep.subr.bf16.mxu0 0
        %1413 = vmatpush2.bf16.msra.mxu0 %v1358
        %1414 = vmatprep.mubr.bf16.mxu0 %v1223
        %1415 = vmatmul.mubr.bf16.gmra.mxu0 %v1222
        %v1416 = vpop.f32.mrf.mxu0
        %v1417 = vadd.f32 0.0, %v1416
        %v1418 = vpop.f32.mrf.mxu0
        %v1419 = vpop.f32.mrf.mxu0
        %v1420 = vadd.f32 0.0, %v1419
        %v1421 = vpop.f32.mrf.mxu0
        %1422 = vmatprep.mubr.bf16.mxu0 %v1225
        %1423 = vmatmul.mubr.bf16.gmra.mxu0 %v1224
        %v1424 = vpop.f32.mrf.mxu0
        %v1425 = vadd.f32 0.0, %v1424
        %v1426 = vpop.f32.mrf.mxu0
        %v1427 = vpop.f32.mrf.mxu0
        %v1428 = vadd.f32 0.0, %v1427
        %v1429 = vpop.f32.mrf.mxu0
        %1430 = vmatprep.mubr.bf16.mxu0 %v1227
        %1431 = vmatmul.mubr.bf16.gmra.mxu0 %v1226
        %v1432 = vpop.f32.mrf.mxu0
        %v1433 = vadd.f32 0.0, %v1432
        %v1434 = vpop.f32.mrf.mxu0
        %v1435 = vpop.f32.mrf.mxu0
        %v1436 = vadd.f32 0.0, %v1435
        %v1437 = vpop.f32.mrf.mxu0
        %1438 = vmatprep.mubr.bf16.mxu0 %v1229
        %1439 = vmatmul.mubr.bf16.gmra.mxu0 %v1228
        %v1440 = vpop.f32.mrf.mxu0
        %v1441 = vadd.f32 0.0, %v1440
        %v1442 = vpop.f32.mrf.mxu0
        %v1443 = vpop.f32.mrf.mxu0
        %v1444 = vadd.f32 0.0, %v1443
        %v1445 = vpop.f32.mrf.mxu0
        %1446 = vmatprep.mubr.bf16.mxu0 %v1231
        %1447 = vmatmul.mubr.bf16.gmra.mxu0 %v1230
        %v1448 = vpop.f32.mrf.mxu0
        %v1449 = vadd.f32 0.0, %v1448
        %v1450 = vpop.f32.mrf.mxu0
        %v1451 = vpop.f32.mrf.mxu0
        %v1452 = vadd.f32 0.0, %v1451
        %v1453 = vpop.f32.mrf.mxu0
        %1454 = vmatprep.mubr.bf16.mxu0 %v1233
        %1455 = vmatmul.mubr.bf16.gmra.mxu0 %v1232
        %v1456 = vpop.f32.mrf.mxu0
        %v1457 = vadd.f32 0.0, %v1456
        %v1458 = vpop.f32.mrf.mxu0
        %v1459 = vpop.f32.mrf.mxu0
        %v1460 = vadd.f32 0.0, %v1459
        %v1461 = vpop.f32.mrf.mxu0
        %1462 = vmatprep.mubr.bf16.mxu0 %v1235
        %1463 = vmatmul.mubr.bf16.gmra.mxu0 %v1234
        %v1464 = vpop.f32.mrf.mxu0
        %v1465 = vadd.f32 0.0, %v1464
        %v1466 = vpop.f32.mrf.mxu0
        %v1467 = vpop.f32.mrf.mxu0
        %v1468 = vadd.f32 0.0, %v1467
        %v1469 = vpop.f32.mrf.mxu0
        %1470 = vmatprep.mubr.bf16.mxu0 %v1237
        %1471 = vmatmul.mubr.bf16.gmra.mxu0 %v1236
        %v1472 = vpop.f32.mrf.mxu0
        %v1473 = vadd.f32 0.0, %v1472
        %v1474 = vpop.f32.mrf.mxu0
        %v1475 = vpop.f32.mrf.mxu0
        %v1476 = vadd.f32 0.0, %v1475
        %v1477 = vpop.f32.mrf.mxu0
        %1478 = vmatprep.mubr.bf16.mxu0 %v1239
        %1479 = vmatmul.mubr.bf16.gmra.mxu0 %v1238
        %v1480 = vpop.f32.mrf.mxu0
        %v1481 = vadd.f32 0.0, %v1480
        %v1482 = vpop.f32.mrf.mxu0
        %v1483 = vpop.f32.mrf.mxu0
        %v1484 = vadd.f32 0.0, %v1483
        %v1485 = vpop.f32.mrf.mxu0
        %1486 = vmatprep.mubr.bf16.mxu0 %v1241
        %1487 = vmatmul.mubr.bf16.gmra.mxu0 %v1240
        %v1488 = vpop.f32.mrf.mxu0
        %v1489 = vadd.f32 0.0, %v1488
        %v1490 = vpop.f32.mrf.mxu0
        %v1491 = vpop.f32.mrf.mxu0
        %v1492 = vadd.f32 0.0, %v1491
        %v1493 = vpop.f32.mrf.mxu0
        %1494 = vmatprep.mubr.bf16.mxu0 %v1243
        %1495 = vmatmul.mubr.bf16.gmra.mxu0 %v1242
        %v1496 = vpop.f32.mrf.mxu0
        %v1497 = vadd.f32 0.0, %v1496
        %v1498 = vpop.f32.mrf.mxu0
        %v1499 = vpop.f32.mrf.mxu0
        %v1500 = vadd.f32 0.0, %v1499
        %v1501 = vpop.f32.mrf.mxu0
        %1502 = vmatprep.mubr.bf16.mxu0 %v1245
        %1503 = vmatmul.mubr.bf16.gmra.mxu0 %v1244
        %v1504 = vpop.f32.mrf.mxu0
        %v1505 = vadd.f32 0.0, %v1504
        %v1506 = vpop.f32.mrf.mxu0
        %v1507 = vpop.f32.mrf.mxu0
        %v1508 = vadd.f32 0.0, %v1507
        %v1509 = vpop.f32.mrf.mxu0
        %1510 = vmatprep.mubr.bf16.mxu0 %v1247
        %1511 = vmatmul.mubr.bf16.gmra.mxu0 %v1246
        %v1512 = vpop.f32.mrf.mxu0
        %v1513 = vadd.f32 0.0, %v1512
        %v1514 = vpop.f32.mrf.mxu0
        %v1515 = vpop.f32.mrf.mxu0
        %v1516 = vadd.f32 0.0, %v1515
        %v1517 = vpop.f32.mrf.mxu0
        %1518 = vmatprep.mubr.bf16.mxu0 %v1249
        %1519 = vmatmul.mubr.bf16.gmra.mxu0 %v1248
        %v1520 = vpop.f32.mrf.mxu0
        %v1521 = vadd.f32 0.0, %v1520
        %v1522 = vpop.f32.mrf.mxu0
        %v1523 = vpop.f32.mrf.mxu0
        %v1524 = vadd.f32 0.0, %v1523
        %v1525 = vpop.f32.mrf.mxu0
        %1526 = vmatprep.mubr.bf16.mxu0 %v1251
        %1527 = vmatmul.mubr.bf16.gmra.mxu0 %v1250
        %v1528 = vpop.f32.mrf.mxu0
        %v1529 = vadd.f32 0.0, %v1528
        %v1530 = vpop.f32.mrf.mxu0
        %v1531 = vpop.f32.mrf.mxu0
        %v1532 = vadd.f32 0.0, %v1531
        %v1533 = vpop.f32.mrf.mxu0
        %1534 = vmatprep.mubr.bf16.mxu0 %v1253
        %1535 = vmatmul.mubr.bf16.gmra.mxu0 %v1252
        %v1536 = vpop.f32.mrf.mxu0
        %v1537 = vadd.f32 0.0, %v1536
        %v1538 = vpop.f32.mrf.mxu0
        %v1539 = vpop.f32.mrf.mxu0
        %v1540 = vadd.f32 0.0, %v1539
        %v1541 = vpop.f32.mrf.mxu0
        %1542 = vdwg.mxu0
        %v1543 = vpack.c.bf16 %v1420, %v1417
        %v1544 = vpack.c.bf16 %v1428, %v1425
        %v1545 = vpack.c.bf16 %v1436, %v1433
        %v1546 = vpack.c.bf16 %v1444, %v1441
        %v1547 = vpack.c.bf16 %v1452, %v1449
        %v1548 = vpack.c.bf16 %v1460, %v1457
        %v1549 = vpack.c.bf16 %v1468, %v1465
        %v1550 = vpack.c.bf16 %v1476, %v1473
        %v1551 = vpack.c.bf16 %v1484, %v1481
        %v1552 = vpack.c.bf16 %v1492, %v1489
        %v1553 = vpack.c.bf16 %v1500, %v1497
        %v1554 = vpack.c.bf16 %v1508, %v1505
        %v1555 = vpack.c.bf16 %v1516, %v1513
        %v1556 = vpack.c.bf16 %v1524, %v1521
        %v1557 = vpack.c.bf16 %v1532, %v1529
        %v1558 = vpack.c.bf16 %v1540, %v1537
        %v1559 = vld [vmem:[%s3] sm:$0xf]
        %v1560 = vld [vmem:[%s3 + $0x4] sm:$0xf]
        %v1561 = vld [vmem:[%s3 + $0x8] sm:$0xf]
        %v1562 = vld [vmem:[%s3 + $0xc] sm:$0xf]
        %v1563 = vld [vmem:[%s3 + $0x10] sm:$0xf]
        %v1564 = vld [vmem:[%s3 + $0x14] sm:$0xf]
        %v1565 = vld [vmem:[%s3 + $0x18] sm:$0xf]
        %v1566 = vld [vmem:[%s3 + $0x1c] sm:$0xf]
        %v1567 = vld [vmem:[%s3 + $0x20] sm:$0xf]
        %v1568 = vld [vmem:[%s3 + $0x24] sm:$0xf]
        %v1569 = vld [vmem:[%s3 + $0x28] sm:$0xf]
        %v1570 = vld [vmem:[%s3 + $0x2c] sm:$0xf]
        %v1571 = vld [vmem:[%s3 + $0x30] sm:$0xf]
        %v1572 = vld [vmem:[%s3 + $0x34] sm:$0xf]
        %v1573 = vld [vmem:[%s3 + $0x38] sm:$0xf]
        %v1574 = vld [vmem:[%s3 + $0x3c] sm:$0xf]
        %v1575 = vld [vmem:[%s4] sm:$0x1]
        %v1577 = vlaneseq
        %v1578 = vshrl.u32 %v1577, 7
        %v1579 = vsub.s32 0, %v1578
        %v1580 = vrot.slane %v1575, %v1579
        %v1598 = vunpack.c.l.b16 %v1559
        %v1599 = vunpack.c.l.b16 %v1560
        %v1600 = vunpack.c.l.b16 %v1561
        %v1601 = vunpack.c.l.b16 %v1562
        %v1602 = vunpack.c.l.b16 %v1563
        %v1603 = vunpack.c.l.b16 %v1564
        %v1604 = vunpack.c.l.b16 %v1565
        %v1605 = vunpack.c.l.b16 %v1566
        %v1606 = vunpack.c.l.b16 %v1567
        %v1607 = vunpack.c.l.b16 %v1568
        %v1608 = vunpack.c.l.b16 %v1569
        %v1609 = vunpack.c.l.b16 %v1570
        %v1610 = vunpack.c.l.b16 %v1571
        %v1611 = vunpack.c.l.b16 %v1572
        %v1612 = vunpack.c.l.b16 %v1573
        %v1613 = vunpack.c.l.b16 %v1574
        %v1614 = vpack.c.b16 %v1599, %v1598
        %v1615 = vpack.c.b16 %v1601, %v1600
        %v1616 = vpack.c.b16 %v1603, %v1602
        %v1617 = vpack.c.b16 %v1605, %v1604
        %v1618 = vpack.c.b16 %v1607, %v1606
        %v1619 = vpack.c.b16 %v1609, %v1608
        %v1620 = vpack.c.b16 %v1611, %v1610
        %v1621 = vpack.c.b16 %v1613, %v1612
        %1630 = vmatprep.subr.bf16.mxu0 0
        %1631 = vmatpush1.bf16.msra.mxu0 %v1621
        %1632 = vmatprep.subr.bf16.mxu0 0
        %1633 = vmatpush1.bf16.msra.mxu0 %v1620
        %1634 = vmatprep.subr.bf16.mxu0 0
        %1635 = vmatpush1.bf16.msra.mxu0 %v1619
        %1636 = vmatprep.subr.bf16.mxu0 0
        %1637 = vmatpush1.bf16.msra.mxu0 %v1618
        %1638 = vmatprep.subr.bf16.mxu0 0
        %1639 = vmatpush1.bf16.msra.mxu0 %v1617
        %1640 = vmatprep.subr.bf16.mxu0 0
        %1641 = vmatpush1.bf16.msra.mxu0 %v1616
        %1642 = vmatprep.subr.bf16.mxu0 0
        %1643 = vmatpush1.bf16.msra.mxu0 %v1615
        %1644 = vmatprep.subr.bf16.mxu0 0
        %1645 = vmatpush1.bf16.msra.mxu0 %v1614
        %1646 = vmatprep.subr.bf16.mxu0 0
        %1647 = vmatpush2.bf16.msra.mxu0 0
        %1648 = vmatprep.subr.bf16.mxu0 0
        %1649 = vmatpush2.bf16.msra.mxu0 0
        %1650 = vmatprep.subr.bf16.mxu0 0
        %1651 = vmatpush2.bf16.msra.mxu0 0
        %1652 = vmatprep.subr.bf16.mxu0 0
        %1653 = vmatpush2.bf16.msra.mxu0 0
        %1654 = vmatprep.subr.bf16.mxu0 0
        %1655 = vmatpush2.bf16.msra.mxu0 0
        %1656 = vmatprep.subr.bf16.mxu0 0
        %1657 = vmatpush2.bf16.msra.mxu0 0
        %1658 = vmatprep.subr.bf16.mxu0 0
        %1659 = vmatpush2.bf16.msra.mxu0 0
        %1660 = vmatprep.subr.bf16.mxu0 0
        %1661 = vmatpush2.bf16.msra.mxu0 0
        %1662 = vmatprep.mubr.bf16.mxu0 0
        %1663 = vmatmul.mubr.bf16.gmra.mxu0 %v1543
        %v1664 = vpop.f32.mrf.mxu0
        %v1665 = vadd.f32 %v1580, %v1664
        %v1666 = vpop.f32.mrf.mxu0
        %v1667 = vpop.f32.mrf.mxu0
        %v1668 = vadd.f32 %v1580, %v1667
        %v1669 = vpop.f32.mrf.mxu0
        %1670 = vmatprep.mubr.bf16.mxu0 0
        %1671 = vmatmul.mubr.bf16.gmra.mxu0 %v1544
        %v1672 = vpop.f32.mrf.mxu0
        %v1673 = vadd.f32 %v1580, %v1672
        %v1674 = vpop.f32.mrf.mxu0
        %v1675 = vpop.f32.mrf.mxu0
        %v1676 = vadd.f32 %v1580, %v1675
        %v1677 = vpop.f32.mrf.mxu0
        %1678 = vmatprep.mubr.bf16.mxu0 0
        %1679 = vmatmul.mubr.bf16.gmra.mxu0 %v1545
        %v1680 = vpop.f32.mrf.mxu0
        %v1681 = vadd.f32 %v1580, %v1680
        %v1682 = vpop.f32.mrf.mxu0
        %v1683 = vpop.f32.mrf.mxu0
        %v1684 = vadd.f32 %v1580, %v1683
        %v1685 = vpop.f32.mrf.mxu0
        %1686 = vmatprep.mubr.bf16.mxu0 0
        %1687 = vmatmul.mubr.bf16.gmra.mxu0 %v1546
        %v1688 = vpop.f32.mrf.mxu0
        %v1689 = vadd.f32 %v1580, %v1688
        %v1690 = vpop.f32.mrf.mxu0
        %v1691 = vpop.f32.mrf.mxu0
        %v1692 = vadd.f32 %v1580, %v1691
        %v1693 = vpop.f32.mrf.mxu0
        %1694 = vmatprep.mubr.bf16.mxu0 0
        %1695 = vmatmul.mubr.bf16.gmra.mxu0 %v1547
        %v1696 = vpop.f32.mrf.mxu0
        %v1697 = vadd.f32 %v1580, %v1696
        %v1698 = vpop.f32.mrf.mxu0
        %v1699 = vpop.f32.mrf.mxu0
        %v1700 = vadd.f32 %v1580, %v1699
        %v1701 = vpop.f32.mrf.mxu0
        %1702 = vmatprep.mubr.bf16.mxu0 0
        %1703 = vmatmul.mubr.bf16.gmra.mxu0 %v1548
        %v1704 = vpop.f32.mrf.mxu0
        %v1705 = vadd.f32 %v1580, %v1704
        %v1706 = vpop.f32.mrf.mxu0
        %v1707 = vpop.f32.mrf.mxu0
        %v1708 = vadd.f32 %v1580, %v1707
        %v1709 = vpop.f32.mrf.mxu0
        %1710 = vmatprep.mubr.bf16.mxu0 0
        %1711 = vmatmul.mubr.bf16.gmra.mxu0 %v1549
        %v1712 = vpop.f32.mrf.mxu0
        %v1713 = vadd.f32 %v1580, %v1712
        %v1714 = vpop.f32.mrf.mxu0
        %v1715 = vpop.f32.mrf.mxu0
        %v1716 = vadd.f32 %v1580, %v1715
        %v1717 = vpop.f32.mrf.mxu0
        %1718 = vmatprep.mubr.bf16.mxu0 0
        %1719 = vmatmul.mubr.bf16.gmra.mxu0 %v1550
        %v1720 = vpop.f32.mrf.mxu0
        %v1721 = vadd.f32 %v1580, %v1720
        %v1722 = vpop.f32.mrf.mxu0
        %v1723 = vpop.f32.mrf.mxu0
        %v1724 = vadd.f32 %v1580, %v1723
        %v1725 = vpop.f32.mrf.mxu0
        %1726 = vmatprep.mubr.bf16.mxu0 0
        %1727 = vmatmul.mubr.bf16.gmra.mxu0 %v1551
        %v1728 = vpop.f32.mrf.mxu0
        %v1729 = vadd.f32 %v1580, %v1728
        %v1730 = vpop.f32.mrf.mxu0
        %v1731 = vpop.f32.mrf.mxu0
        %v1732 = vadd.f32 %v1580, %v1731
        %v1733 = vpop.f32.mrf.mxu0
        %1734 = vmatprep.mubr.bf16.mxu0 0
        %1735 = vmatmul.mubr.bf16.gmra.mxu0 %v1552
        %v1736 = vpop.f32.mrf.mxu0
        %v1737 = vadd.f32 %v1580, %v1736
        %v1738 = vpop.f32.mrf.mxu0
        %v1739 = vpop.f32.mrf.mxu0
        %v1740 = vadd.f32 %v1580, %v1739
        %v1741 = vpop.f32.mrf.mxu0
        %1742 = vmatprep.mubr.bf16.mxu0 0
        %1743 = vmatmul.mubr.bf16.gmra.mxu0 %v1553
        %v1744 = vpop.f32.mrf.mxu0
        %v1745 = vadd.f32 %v1580, %v1744
        %v1746 = vpop.f32.mrf.mxu0
        %v1747 = vpop.f32.mrf.mxu0
        %v1748 = vadd.f32 %v1580, %v1747
        %v1749 = vpop.f32.mrf.mxu0
        %1750 = vmatprep.mubr.bf16.mxu0 0
        %1751 = vmatmul.mubr.bf16.gmra.mxu0 %v1554
        %v1752 = vpop.f32.mrf.mxu0
        %v1753 = vadd.f32 %v1580, %v1752
        %v1754 = vpop.f32.mrf.mxu0
        %v1755 = vpop.f32.mrf.mxu0
        %v1756 = vadd.f32 %v1580, %v1755
        %v1757 = vpop.f32.mrf.mxu0
        %1758 = vmatprep.mubr.bf16.mxu0 0
        %1759 = vmatmul.mubr.bf16.gmra.mxu0 %v1555
        %v1760 = vpop.f32.mrf.mxu0
        %v1761 = vadd.f32 %v1580, %v1760
        %v1762 = vpop.f32.mrf.mxu0
        %v1763 = vpop.f32.mrf.mxu0
        %v1764 = vadd.f32 %v1580, %v1763
        %v1765 = vpop.f32.mrf.mxu0
        %1766 = vmatprep.mubr.bf16.mxu0 0
        %1767 = vmatmul.mubr.bf16.gmra.mxu0 %v1556
        %v1768 = vpop.f32.mrf.mxu0
        %v1769 = vadd.f32 %v1580, %v1768
        %v1770 = vpop.f32.mrf.mxu0
        %v1771 = vpop.f32.mrf.mxu0
        %v1772 = vadd.f32 %v1580, %v1771
        %v1773 = vpop.f32.mrf.mxu0
        %1774 = vmatprep.mubr.bf16.mxu0 0
        %1775 = vmatmul.mubr.bf16.gmra.mxu0 %v1557
        %v1776 = vpop.f32.mrf.mxu0
        %v1777 = vadd.f32 %v1580, %v1776
        %v1778 = vpop.f32.mrf.mxu0
        %v1779 = vpop.f32.mrf.mxu0
        %v1780 = vadd.f32 %v1580, %v1779
        %v1781 = vpop.f32.mrf.mxu0
        %1782 = vmatprep.mubr.bf16.mxu0 0
        %1783 = vmatmul.mubr.bf16.gmra.mxu0 %v1558
        %v1784 = vpop.f32.mrf.mxu0
        %v1785 = vadd.f32 %v1580, %v1784
        %v1786 = vpop.f32.mrf.mxu0
        %v1787 = vpop.f32.mrf.mxu0
        %v1788 = vadd.f32 %v1580, %v1787
        %v1789 = vpop.f32.mrf.mxu0
        %1790 = vdwg.mxu0
        %v1791 = vlaneseq
        %v1792 = vshrl.u32 %v1791, 7
        %v1793 = vld [vmem:[%s352] sm:$0x3]
        %v1794 = vlaneseq
        %v1795 = vshrl.u32 %v1794, 7
        %v1796 = vsub.s32 0, %v1795
        %v1797 = vrot.slane %v1793, %v1796
        %v1798 = vlaneseq
        %v1799 = vshrl.u32 %v1798, 7
        %v1800 = vsub.s32 1, %v1799
        %v1801 = vrot.slane %v1793, %v1800
        %vm1802 = vcmp.eq.s32.totalorder %v1797, %v1792
        %vm1803 = vcmp.eq.s32.totalorder %v1801, %v1792
        %v1804 = vsel %vm1802, 1, 0
        %v1805 = vsel %vm1803, 1, 0
        %v1806 = vcvt.s32.f32 %v1804
        %v1807 = vcvt.s32.f32 %v1805
        %v1808 = vpack.c.bf16 %v1806, %v1806
        %v1809 = vpack.c.bf16 %v1807, %v1807
        %v1810 = vld [vmem:[#allocation3] sm:$0xff]
        %v1811 = vpack.c.bf16 %v1668, %v1665
        %v1812 = vpack.c.bf16 %v1676, %v1673
        %v1813 = vpack.c.bf16 %v1684, %v1681
        %v1814 = vpack.c.bf16 %v1692, %v1689
        %v1815 = vpack.c.bf16 %v1700, %v1697
        %v1816 = vpack.c.bf16 %v1708, %v1705
        %v1817 = vpack.c.bf16 %v1716, %v1713
        %v1818 = vpack.c.bf16 %v1724, %v1721
        %v1819 = vpack.c.bf16 %v1732, %v1729
        %v1820 = vpack.c.bf16 %v1740, %v1737
        %v1821 = vpack.c.bf16 %v1748, %v1745
        %v1822 = vpack.c.bf16 %v1756, %v1753
        %v1823 = vpack.c.bf16 %v1764, %v1761
        %v1824 = vpack.c.bf16 %v1772, %v1769
        %v1825 = vpack.c.bf16 %v1780, %v1777
        %v1826 = vpack.c.bf16 %v1788, %v1785
        %1827 = vmatprep.subr.bf16.mxu0 0
        %1828 = vmatpush1.bf16.msra.mxu0 %v1818
        %1829 = vmatprep.subr.bf16.mxu0 0
        %1830 = vmatpush1.bf16.msra.mxu0 %v1817
        %1831 = vmatprep.subr.bf16.mxu0 0
        %1832 = vmatpush1.bf16.msra.mxu0 %v1816
        %1833 = vmatprep.subr.bf16.mxu0 0
        %1834 = vmatpush1.bf16.msra.mxu0 %v1815
        %1835 = vmatprep.subr.bf16.mxu0 0
        %1836 = vmatpush1.bf16.msra.mxu0 %v1814
        %1837 = vmatprep.subr.bf16.mxu0 0
        %1838 = vmatpush1.bf16.msra.mxu0 %v1813
        %1839 = vmatprep.subr.bf16.mxu0 0
        %1840 = vmatpush1.bf16.msra.mxu0 %v1812
        %1841 = vmatprep.subr.bf16.mxu0 0
        %1842 = vmatpush1.bf16.msra.mxu0 %v1811
        %1843 = vmatprep.subr.bf16.mxu0 0
        %1844 = vmatpush2.bf16.msra.mxu0 %v1826
        %1845 = vmatprep.subr.bf16.mxu0 0
        %1846 = vmatpush2.bf16.msra.mxu0 %v1825
        %1847 = vmatprep.subr.bf16.mxu0 0
        %1848 = vmatpush2.bf16.msra.mxu0 %v1824
        %1849 = vmatprep.subr.bf16.mxu0 0
        %1850 = vmatpush2.bf16.msra.mxu0 %v1823
        %1851 = vmatprep.subr.bf16.mxu0 0
        %1852 = vmatpush2.bf16.msra.mxu0 %v1822
        %1853 = vmatprep.subr.bf16.mxu0 0
        %1854 = vmatpush2.bf16.msra.mxu0 %v1821
        %1855 = vmatprep.subr.bf16.mxu0 0
        %1856 = vmatpush2.bf16.msra.mxu0 %v1820
        %1857 = vmatprep.subr.bf16.mxu0 0
        %1858 = vmatpush2.bf16.msra.mxu0 %v1819
        %1859 = vmatprep.mubr.bf16.mxu0 %v1809
        %1860 = vmatmul.mubr.bf16.gmra.mxu0 %v1808
        %v1861 = vpop.f32.mrf.mxu0
        %v1862 = vadd.f32 0.0, %v1861
        %v1863 = vpop.f32.mrf.mxu0
        %v1864 = vpop.f32.mrf.mxu0
        %v1865 = vpop.f32.mrf.mxu0
        %1866 = vdwg.mxu0
        %v1867 = vadd.f32 %v1810, %v1862
        %1868 = vst [vmem:[#allocation3] sm:$0xff] %v1867
      $region68: #{base_model_forward.1} parent=55 // pred_fallthru
        _
      // Predicated region
      $region69: #{base_model_forward.1} parent=55 // pred_check
        _
      $region70: #{base_model_forward.1} parent=55 // pred_check_branch
        %1870 = sbr.rel (%p1049) target = $region72
      $region71: #{base_model_forward.1} parent=55 // pred_region
        %v1871 = vld [vmem:[#allocation3] sm:$0xff]
        %v1872 = vld [vmem:[%s6] sm:$0xff]
        %1874 = vset.pattern.permute.xlu0 0
        %1875 = vperm.xlu0 %1874, %v1872
        %v1876 = vpop.permute.xlu0 %1875
        %v1878 = vmul.f32 %v1871, %v1876
        %1879 = vst [vmem:[%s10] sm:$0xff] %v1878
        %v1880 = vpack.c.bf16 %v1878, %v1878
        %v1881 = vld [vmem:[%s7] sm:$0xf]
        %v1882 = vld [vmem:[%s7 + $0x4] sm:$0xf]
        %v1883 = vld [vmem:[%s7 + $0x8] sm:$0xf]
        %v1884 = vld [vmem:[%s7 + $0xc] sm:$0xf]
        %v1885 = vld [vmem:[%s7 + $0x10] sm:$0xf]
        %v1886 = vld [vmem:[%s7 + $0x14] sm:$0xf]
        %v1887 = vld [vmem:[%s7 + $0x18] sm:$0xf]
        %v1888 = vld [vmem:[%s7 + $0x1c] sm:$0xf]
        %v1889 = vld [vmem:[%s7 + $0x20] sm:$0xf]
        %v1890 = vld [vmem:[%s7 + $0x24] sm:$0xf]
        %v1891 = vld [vmem:[%s7 + $0x28] sm:$0xf]
        %v1892 = vld [vmem:[%s7 + $0x2c] sm:$0xf]
        %v1893 = vld [vmem:[%s7 + $0x30] sm:$0xf]
        %v1894 = vld [vmem:[%s7 + $0x34] sm:$0xf]
        %v1895 = vld [vmem:[%s7 + $0x38] sm:$0xf]
        %v1896 = vld [vmem:[%s7 + $0x3c] sm:$0xf]
        %v1897 = vld [vmem:[%s8] sm:$0x1]
        %v1899 = vlaneseq
        %v1900 = vshrl.u32 %v1899, 7
        %v1901 = vsub.s32 0, %v1900
        %v1902 = vrot.slane %v1897, %v1901
        %v1920 = vunpack.c.l.b16 %v1881
        %v1921 = vunpack.c.l.b16 %v1882
        %v1922 = vunpack.c.l.b16 %v1883
        %v1923 = vunpack.c.l.b16 %v1884
        %v1924 = vunpack.c.l.b16 %v1885
        %v1925 = vunpack.c.l.b16 %v1886
        %v1926 = vunpack.c.l.b16 %v1887
        %v1927 = vunpack.c.l.b16 %v1888
        %v1928 = vunpack.c.l.b16 %v1889
        %v1929 = vunpack.c.l.b16 %v1890
        %v1930 = vunpack.c.l.b16 %v1891
        %v1931 = vunpack.c.l.b16 %v1892
        %v1932 = vunpack.c.l.b16 %v1893
        %v1933 = vunpack.c.l.b16 %v1894
        %v1934 = vunpack.c.l.b16 %v1895
        %v1935 = vunpack.c.l.b16 %v1896
        %v1936 = vpack.c.b16 %v1921, %v1920
        %v1937 = vpack.c.b16 %v1923, %v1922
        %v1938 = vpack.c.b16 %v1925, %v1924
        %v1939 = vpack.c.b16 %v1927, %v1926
        %v1940 = vpack.c.b16 %v1929, %v1928
        %v1941 = vpack.c.b16 %v1931, %v1930
        %v1942 = vpack.c.b16 %v1933, %v1932
        %v1943 = vpack.c.b16 %v1935, %v1934
        %1952 = vmatprep.subr.bf16.mxu0 0
        %1953 = vmatpush1.bf16.msra.mxu0 %v1943
        %1954 = vmatprep.subr.bf16.mxu0 0
        %1955 = vmatpush1.bf16.msra.mxu0 %v1942
        %1956 = vmatprep.subr.bf16.mxu0 0
        %1957 = vmatpush1.bf16.msra.mxu0 %v1941
        %1958 = vmatprep.subr.bf16.mxu0 0
        %1959 = vmatpush1.bf16.msra.mxu0 %v1940
        %1960 = vmatprep.subr.bf16.mxu0 0
        %1961 = vmatpush1.bf16.msra.mxu0 %v1939
        %1962 = vmatprep.subr.bf16.mxu0 0
        %1963 = vmatpush1.bf16.msra.mxu0 %v1938
        %1964 = vmatprep.subr.bf16.mxu0 0
        %1965 = vmatpush1.bf16.msra.mxu0 %v1937
        %1966 = vmatprep.subr.bf16.mxu0 0
        %1967 = vmatpush1.bf16.msra.mxu0 %v1936
        %1968 = vmatprep.subr.bf16.mxu0 0
        %1969 = vmatpush2.bf16.msra.mxu0 0
        %1970 = vmatprep.subr.bf16.mxu0 0
        %1971 = vmatpush2.bf16.msra.mxu0 0
        %1972 = vmatprep.subr.bf16.mxu0 0
        %1973 = vmatpush2.bf16.msra.mxu0 0
        %1974 = vmatprep.subr.bf16.mxu0 0
        %1975 = vmatpush2.bf16.msra.mxu0 0
        %1976 = vmatprep.subr.bf16.mxu0 0
        %1977 = vmatpush2.bf16.msra.mxu0 0
        %1978 = vmatprep.subr.bf16.mxu0 0
        %1979 = vmatpush2.bf16.msra.mxu0 0
        %1980 = vmatprep.subr.bf16.mxu0 0
        %1981 = vmatpush2.bf16.msra.mxu0 0
        %1982 = vmatprep.subr.bf16.mxu0 0
        %1983 = vmatpush2.bf16.msra.mxu0 0
        %1984 = vmatprep.mubr.bf16.mxu0 0
        %1985 = vmatmul.mubr.bf16.gmra.mxu0 %v1880
        %v1986 = vpop.f32.mrf.mxu0
        %v1987 = vadd.f32 %v1902, %v1986
        %v1988 = vpop.f32.mrf.mxu0
        %v1989 = vpop.f32.mrf.mxu0
        %v1990 = vpop.f32.mrf.mxu0
        %1991 = vdwg.mxu0
        %1992 = vst [vmem:[%s9] sm:$0xff] %v1987
      $region72: #{base_model_forward.1} parent=55 // pred_fallthru
        _
      // Predicated region
      $region73: #{base_model_forward.1} parent=55 // pred_check
        %p1993 = pneg %p241
      $region74: #{base_model_forward.1} parent=55 // pred_check_branch
        %1995 = sbr.rel (%p1993) target = $region76
      $region75: #{base_model_forward.1} parent=55 // pred_region
        _
      $region76: #{base_model_forward.1} parent=55 // pred_fallthru
        _
      // Predicated region
      $region77: #{base_model_forward.1} parent=55 // pred_check
        %p1996 = pneg %p262
      $region78: #{base_model_forward.1} parent=55 // pred_check_branch
        %1998 = sbr.rel (%p1996) target = $region80
      $region79: #{base_model_forward.1} parent=55 // pred_region
        _
      $region80: #{base_model_forward.1} parent=55 // pred_fallthru
        _
      // Predicated region
      $region81: #{base_model_forward.1} parent=55 // pred_check
        %p1999 = pneg %p241
      $region82: #{base_model_forward.1} parent=55 // pred_check_branch
        %2001 = sbr.rel (%p1999) target = $region84
      $region83: #{base_model_forward.1} parent=55 // pred_region
        _
      $region84: #{base_model_forward.1} parent=55 // pred_fallthru
        _
      // Predicated region
      $region85: #{base_model_forward.1} parent=55 // pred_check
        %p2002 = pneg %p262
      $region86: #{base_model_forward.1} parent=55 // pred_check_branch
        %2004 = sbr.rel (%p2002) target = $region88
      $region87: #{base_model_forward.1} parent=55 // pred_region
        _
      $region88: #{base_model_forward.1} parent=55 // pred_fallthru
        _
    $region56: #{base_model_forward.1} parent=5 // pred_fallthru
      _
    %p2005 = scmp.le.s32.totalorder 2, %s17
    // Predicated region
    $region89: #{base_model_forward.1} parent=5 // pred_check
      %p2006 = pneg %p2005
    $region90: #{base_model_forward.1} parent=5 // pred_check_branch
      %2008 = sbr.rel (%p2006) target = $region92
    $region91: #{base_model_forward.1} parent=5 // pred_region
      %s2009 = ssub.s32 %s17, 2
    $region92: #{base_model_forward.1} parent=5 // pred_fallthru
      _
  $region6: #{base_model_forward.1} parent=0 // loop_footer
    %s21 = sadd.s32 1, %s17
  $region7: #{base_model_forward.1} parent=0 // loop_footer_branch
    %16 = sbr.rel target = $region3
  $region8: #{base_model_forward.1} parent=0 // loop_exit
    _

</llo_original>
